<compile_context>
chip_gen: v7x
topology: tpu7x:2x2x1
jax: 0.10.0
libtpu: 0.0.40
codegen_flags: <defaults>
</compile_context>

<pallas_src>
import jax
import jax.numpy as jnp
from jax.experimental import pallas as pl
from jax.experimental.pallas import tpu as pltpu

EPS = 1e-5  # PyTorch BatchNorm2d default


def basic_block_kernel(x_ref, t1_ref, t2_ref, g1_ref, b1_ref, g2_ref, b2_ref,
                       sel_ref, selt_ref, o_ref, pad_ref):
    """x_ref:   (N, H, W*C) f32 input (lane = w*C + c).
    t1/t2_ref:  (3*W*C, W*C) bf16 banded conv matrices (kh-major rows).
    g*/b*_ref:  (1, C) f32 BatchNorm affine params.
    sel_ref:    (W*C, C) f32 selector (lane l -> channel l % C).
    selt_ref:   (C, W*C) f32 selector transpose (channel -> lanes).
    o_ref:      (N, H, W*C) f32 output (lane-dense store).
    pad_ref:    VMEM scratch (N, H+2, W*C) f32, H-halo padded activations,
                reused by both convs (halo rows zeroed once)."""
    N, H, WC = x_ref.shape
    C = g1_ref.shape[1]
    W = WC // C
    M = N * H
    inv_cnt = 1.0 / float(N * H * W)   # BN reduction count per channel

    x = x_ref[...]                                             # (N, H, WC) f32

    # Zero only the two H-halo rows (not the whole scratch); W padding is
    # baked into the banded weight matrices, so no W halo exists at all.
    pad_ref[:, 0:1, :] = jnp.zeros((N, 1, WC), jnp.float32)
    pad_ref[:, H + 1:H + 2, :] = jnp.zeros((N, 1, WC), jnp.float32)

    def conv(t_ref):
        # im2col over the 3 kh taps -> single MXU matmul, bf16 in / f32 acc.
        taps = jnp.concatenate(
            [pad_ref[:, kh:kh + H, :].reshape(M, WC) for kh in range(3)],
            axis=-1)                                           # (M, 3*WC) f32
        return jnp.dot(taps.astype(jnp.bfloat16), t_ref[...],
                       preferred_element_type=jnp.float32)     # (M, WC) f32

    def batchnorm(acc, g_ref, b_ref):
        # One-pass stats: per-lane sums folded to per-channel via selector
        # matmul (avoids minor-dim reshapes), var = E[x^2] - mu^2.
        s = jnp.dot(jnp.sum(acc, axis=0, keepdims=True), sel_ref[...],
                    preferred_element_type=jnp.float32)        # (1, C)
        ss = jnp.dot(jnp.sum(acc * acc, axis=0, keepdims=True), sel_ref[...],
                     preferred_element_type=jnp.float32)       # (1, C)
        mean = s * inv_cnt
        var = ss * inv_cnt - mean * mean
        scale_c = g_ref[...] * jax.lax.rsqrt(var + EPS)        # (1, C)
        shift_c = b_ref[...] - mean * scale_c                  # (1, C)
        # Broadcast per-channel affine back to the W*C lane layout.
        scale_l = jnp.dot(scale_c, selt_ref[...],
                          preferred_element_type=jnp.float32)  # (1, WC)
        shift_l = jnp.dot(shift_c, selt_ref[...],
                          preferred_element_type=jnp.float32)  # (1, WC)
        return acc * scale_l + shift_l

    # ---- conv1 -> BN1 -> ReLU ----
    pad_ref[:, 1:H + 1, :] = x
    h1 = jnp.maximum(batchnorm(conv(t1_ref), g1_ref, b1_ref), 0.0)  # (M, WC)

    # ---- conv2 -> BN2 (reuse the same padded scratch; halo stays zero) ----
    pad_ref[:, 1:H + 1, :] = h1.reshape(N, H, WC)
    h2 = batchnorm(conv(t2_ref), g2_ref, b2_ref)                     # (M, WC)

    # ---- residual add, lane-dense (W*C-wide) store ----
    o_ref[...] = x + h2.reshape(N, H, WC)


def _band_matrix(w, W):
    """PyTorch conv weight (Cout, Cin, 3, 3) -> (3*W*Cin, W*Cout) banded matrix.

    T[kh*W*C + w_in*C + cin, w_out*C + cout] = w[cout, cin, kh, w_in - w_out + 1]
    inside the 3-wide band, 0 outside, so a 3x3 'same' conv over a (W*C) row
    becomes  out_row(h) = sum_kh padded_row(h + kh) @ T_kh  with the W-boundary
    zero padding baked in.
    """
    C = w.shape[1]
    wk = jnp.transpose(w, (2, 3, 1, 0)).astype(jnp.float32)   # (kh, kw, Cin, Cout)
    wi = jnp.arange(W)[:, None]                                # w_in
    wo = jnp.arange(W)[None, :]                                # w_out
    kw = wi - wo + 1                                           # (W, W)
    in_band = ((kw >= 0) & (kw <= 2)).astype(jnp.float32)
    band = wk[:, jnp.clip(kw, 0, 2)] * in_band[None, :, :, None, None]
    band = jnp.transpose(band, (0, 1, 3, 2, 4))                # (kh, w_in, Cin, w_out, Cout)
    return band.reshape(3 * W * C, W * C)


def basic_block(x_nchw, w1, g1, b1, w2, g2, b2):
    """x_nchw: (N, C, H, W) f32 (PyTorch layout).
    w1, w2: (Cout, Cin, 3, 3) PyTorch Conv2d weights. g*, b*: (C,)."""
    N, C, H, W = x_nchw.shape
    WC = W * C
    # NCHW -> NHWC -> lane-dense (N, H, W*C) slab.
    x = jnp.transpose(x_nchw, (0, 2, 3, 1)).astype(jnp.float32).reshape(N, H, WC)
    # Banded conv matrices, bf16 for the MXU fast path (f32 accumulation).
    t1 = _band_matrix(w1, W).astype(jnp.bfloat16)              # (3*WC, WC)
    t2 = _band_matrix(w2, W).astype(jnp.bfloat16)
    # Lane<->channel selector matrices for the BN reductions / broadcasts.
    lane_ch = jnp.arange(WC) % C
    sel = (lane_ch[:, None] == jnp.arange(C)[None, :]).astype(jnp.float32)
    selt = jnp.transpose(sel)                                  # (C, WC)

    vmem = pl.BlockSpec(memory_space=pltpu.MemorySpace.VMEM)
    out = pl.pallas_call(
        basic_block_kernel,
        out_shape=jax.ShapeDtypeStruct((N, H, WC), jnp.float32),
        in_specs=[vmem] * 9,
        out_specs=vmem,
        scratch_shapes=[pltpu.VMEM((N, H + 2, WC), jnp.float32)],
        compiler_params=pltpu.CompilerParams(
            vmem_limit_bytes=32 * 1024 * 1024),
    )(x, t1, t2,
      g1.reshape(1, C).astype(jnp.float32), b1.reshape(1, C).astype(jnp.float32),
      g2.reshape(1, C).astype(jnp.float32), b2.reshape(1, C).astype(jnp.float32),
      sel, selt)
    # Back to PyTorch NCHW.
    return jnp.transpose(out.reshape(N, H, W, C), (0, 3, 1, 2))


def reference(x, w1, g1, b1, w2, g2, b2):
    """Pure-JAX f32 reference matching PyTorch training-mode forward."""
    def conv(y, w):
        return jax.lax.conv_general_dilated(
            y, w, window_strides=(1, 1), padding=((1, 1), (1, 1)),
            dimension_numbers=("NCHW", "OIHW", "NCHW"))

    def bn(y, g, b):
        mu = jnp.mean(y, axis=(0, 2, 3), keepdims=True)
        var = jnp.mean((y - mu) ** 2, axis=(0, 2, 3), keepdims=True)
        return ((y - mu) / jnp.sqrt(var + EPS)
                * g.reshape(1, -1, 1, 1) + b.reshape(1, -1, 1, 1))

    h = jax.nn.relu(bn(conv(x, w1), g1, b1))
    h = bn(conv(h, w2), g2, b2)
    return x + h


if __name__ == "__main__":
    N, C, H, W = 2, 8, 16, 16   # small, consistent with the module; W*C = 128
    key = jax.random.PRNGKey(0)
    kx, k1, k2, kg1, kb1, kg2, kb2 = jax.random.split(key, 7)

    x = jax.random.normal(kx, (N, C, H, W), jnp.float32)
    w1 = jax.random.normal(k1, (C, C, 3, 3), jnp.float32) * 0.1
    w2 = jax.random.normal(k2, (C, C, 3, 3), jnp.float32) * 0.1
    g1 = jax.random.uniform(kg1, (C,), jnp.float32, 0.5, 1.5)
    b1 = jax.random.normal(kb1, (C,), jnp.float32) * 0.1
    g2 = jax.random.uniform(kg2, (C,), jnp.float32, 0.5, 1.5)
    b2 = jax.random.normal(kb2, (C,), jnp.float32) * 0.1

    out = jax.block_until_ready(basic_block(x, w1, g1, b1, w2, g2, b2))
    ref = jax.block_until_ready(reference(x, w1, g1, b1, w2, g2, b2))

    assert out.shape == (N, C, H, W)
    # Tolerance sized for bf16 matmul inputs (f32 accumulation) vs f32 reference.
    assert jnp.allclose(out, ref, atol=5e-2, rtol=5e-2), (
        float(jnp.max(jnp.abs(out - ref))))
    print("KERNEL_OK")
</pallas_src>

<mosaic_0001>
module attributes {stable_mosaic.version = 11 : i64} {
  func.func @basic_block_kernel(%arg0: memref<2x16x128xf32, #tpu.memory_space<vmem>>, %arg1: memref<384x128xbf16, #tpu.memory_space<vmem>>, %arg2: memref<384x128xbf16, #tpu.memory_space<vmem>>, %arg3: memref<1x8xf32, #tpu.memory_space<vmem>>, %arg4: memref<1x8xf32, #tpu.memory_space<vmem>>, %arg5: memref<1x8xf32, #tpu.memory_space<vmem>>, %arg6: memref<1x8xf32, #tpu.memory_space<vmem>>, %arg7: memref<128x8xf32, #tpu.memory_space<vmem>>, %arg8: memref<8x128xf32, #tpu.memory_space<vmem>>, %arg9: memref<2x16x128xf32, #tpu.memory_space<vmem>>, %arg10: memref<2x18x128xf32, #tpu.memory_space<vmem>>) attributes {dimension_semantics = [], scalar_prefetch = 0 : i64, scratch_operands = 1 : i64, tpu.core_type = #tpu.core_type<tc>} {
    %c0 = arith.constant 0 : index
    %c0_0 = arith.constant 0 : index
    %c0_1 = arith.constant 0 : index
    %0 = vector.load %arg0[%c0, %c0_0, %c0_1] : memref<2x16x128xf32, #tpu.memory_space<vmem>>, vector<2x16x128xf32>
    %cst = arith.constant 0.000000e+00 : f32
    %1 = vector.broadcast %cst : f32 to vector<2x1x128xf32>
    %c0_2 = arith.constant 0 : index
    %c0_3 = arith.constant 0 : index
    %c0_4 = arith.constant 0 : index
    %2 = vector.load %arg10[%c0_2, %c0_3, %c0_4] : memref<2x18x128xf32, #tpu.memory_space<vmem>>, vector<2x1x128xf32>
    tpu.vector_store %arg10[%c0_2, %c0_3, %c0_4], %1 {strides = array<i32>} : memref<2x18x128xf32, #tpu.memory_space<vmem>>, vector<2x1x128xf32>,
    %cst_5 = arith.constant 0.000000e+00 : f32
    %3 = vector.broadcast %cst_5 : f32 to vector<2x1x128xf32>
    %c0_6 = arith.constant 0 : index
    %c17 = arith.constant 17 : index
    %c0_7 = arith.constant 0 : index
    %4 = vector.load %arg10[%c0_6, %c17, %c0_7] : memref<2x18x128xf32, #tpu.memory_space<vmem>>, vector<2x1x128xf32>
    tpu.vector_store %arg10[%c0_6, %c17, %c0_7], %3 {strides = array<i32>} : memref<2x18x128xf32, #tpu.memory_space<vmem>>, vector<2x1x128xf32>,
    %c0_8 = arith.constant 0 : index
    %c1 = arith.constant 1 : index
    %c0_9 = arith.constant 0 : index
    %5 = vector.load %arg10[%c0_8, %c1, %c0_9] : memref<2x18x128xf32, #tpu.memory_space<vmem>>, vector<2x16x128xf32>
    tpu.vector_store %arg10[%c0_8, %c1, %c0_9], %0 {strides = array<i32>} : memref<2x18x128xf32, #tpu.memory_space<vmem>>, vector<2x16x128xf32>,
    %c0_10 = arith.constant 0 : index
    %c0_11 = arith.constant 0 : index
    %c0_12 = arith.constant 0 : index
    %6 = vector.load %arg10[%c0_10, %c0_11, %c0_12] : memref<2x18x128xf32, #tpu.memory_space<vmem>>, vector<2x16x128xf32>
    %7 = vector.shape_cast %6 : vector<2x16x128xf32> to vector<32x128xf32>
    %c0_13 = arith.constant 0 : index
    %c1_14 = arith.constant 1 : index
    %c0_15 = arith.constant 0 : index
    %8 = vector.load %arg10[%c0_13, %c1_14, %c0_15] : memref<2x18x128xf32, #tpu.memory_space<vmem>>, vector<2x16x128xf32>
    %9 = vector.shape_cast %8 : vector<2x16x128xf32> to vector<32x128xf32>
    %c0_16 = arith.constant 0 : index
    %c2 = arith.constant 2 : index
    %c0_17 = arith.constant 0 : index
    %10 = vector.load %arg10[%c0_16, %c2, %c0_17] : memref<2x18x128xf32, #tpu.memory_space<vmem>>, vector<2x16x128xf32>
    %11 = vector.shape_cast %10 : vector<2x16x128xf32> to vector<32x128xf32>
    %12 = tpu.concatenate %7, %9, %11 in 1 : vector<32x128xf32>, vector<32x128xf32>, vector<32x128xf32> -> vector<32x384xf32>
    %13 = arith.truncf %12 : vector<32x384xf32> to vector<32x384xbf16>
    %c0_18 = arith.constant 0 : index
    %c0_19 = arith.constant 0 : index
    %14 = vector.load %arg1[%c0_18, %c0_19] : memref<384x128xbf16, #tpu.memory_space<vmem>>, vector<384x128xbf16>
    %cst_20 = arith.constant dense<0.000000e+00> : vector<32x128xf32>
    %15 = tpu.matmul %13, %14, %cst_20 {dimension_numbers = #tpu.dot_dimension_numbers<[1], [0], [0], [1], [0, 0, 1, 1], [], []>} : vector<32x384xbf16>, vector<384x128xbf16>, vector<32x128xf32> -> vector<32x128xf32>
    %cst_21 = arith.constant dense<0.000000e+00> : vector<128xf32>
    %16 = vector.multi_reduction <add>, %15, %cst_21 [0] : vector<32x128xf32> to vector<128xf32>
    %17 = vector.shape_cast %16 : vector<128xf32> to vector<1x128xf32>
    %c0_22 = arith.constant 0 : index
    %c0_23 = arith.constant 0 : index
    %18 = vector.load %arg7[%c0_22, %c0_23] : memref<128x8xf32, #tpu.memory_space<vmem>>, vector<128x8xf32>
    %cst_24 = arith.constant dense<0.000000e+00> : vector<1x8xf32>
    %19 = tpu.matmul %17, %18, %cst_24 {dimension_numbers = #tpu.dot_dimension_numbers<[1], [0], [0], [1], [0, 0, 1, 1], [], []>} : vector<1x128xf32>, vector<128x8xf32>, vector<1x8xf32> -> vector<1x8xf32>
    %20 = arith.mulf %15, %15 : vector<32x128xf32>
    %cst_25 = arith.constant dense<0.000000e+00> : vector<128xf32>
    %21 = vector.multi_reduction <add>, %20, %cst_25 [0] : vector<32x128xf32> to vector<128xf32>
    %22 = vector.shape_cast %21 : vector<128xf32> to vector<1x128xf32>
    %c0_26 = arith.constant 0 : index
    %c0_27 = arith.constant 0 : index
    %23 = vector.load %arg7[%c0_26, %c0_27] : memref<128x8xf32, #tpu.memory_space<vmem>>, vector<128x8xf32>
    %cst_28 = arith.constant dense<0.000000e+00> : vector<1x8xf32>
    %24 = tpu.matmul %22, %23, %cst_28 {dimension_numbers = #tpu.dot_dimension_numbers<[1], [0], [0], [1], [0, 0, 1, 1], [], []>} : vector<1x128xf32>, vector<128x8xf32>, vector<1x8xf32> -> vector<1x8xf32>
    %cst_29 = arith.constant 0.001953125 : f32
    %25 = vector.broadcast %cst_29 : f32 to vector<1x8xf32>
    %26 = arith.mulf %19, %25 : vector<1x8xf32>
    %cst_30 = arith.constant 0.001953125 : f32
    %27 = vector.broadcast %cst_30 : f32 to vector<1x8xf32>
    %28 = arith.mulf %24, %27 : vector<1x8xf32>
    %29 = arith.mulf %26, %26 : vector<1x8xf32>
    %30 = arith.subf %28, %29 : vector<1x8xf32>
    %c0_31 = arith.constant 0 : index
    %c0_32 = arith.constant 0 : index
    %31 = vector.load %arg3[%c0_31, %c0_32] : memref<1x8xf32, #tpu.memory_space<vmem>>, vector<1x8xf32>
    %cst_33 = arith.constant 9.99999974E-6 : f32
    %32 = vector.broadcast %cst_33 : f32 to vector<1x8xf32>
    %33 = arith.addf %30, %32 : vector<1x8xf32>
    %34 = math.rsqrt %33 : vector<1x8xf32>
    %35 = arith.mulf %31, %34 : vector<1x8xf32>
    %c0_34 = arith.constant 0 : index
    %c0_35 = arith.constant 0 : index
    %36 = vector.load %arg4[%c0_34, %c0_35] : memref<1x8xf32, #tpu.memory_space<vmem>>, vector<1x8xf32>
    %37 = arith.mulf %26, %35 : vector<1x8xf32>
    %38 = arith.subf %36, %37 : vector<1x8xf32>
    %c0_36 = arith.constant 0 : index
    %c0_37 = arith.constant 0 : index
    %39 = vector.load %arg8[%c0_36, %c0_37] : memref<8x128xf32, #tpu.memory_space<vmem>>, vector<8x128xf32>
    %cst_38 = arith.constant dense<0.000000e+00> : vector<1x128xf32>
    %40 = tpu.matmul %35, %39, %cst_38 {dimension_numbers = #tpu.dot_dimension_numbers<[1], [0], [0], [1], [0, 0, 1, 1], [], []>} : vector<1x8xf32>, vector<8x128xf32>, vector<1x128xf32> -> vector<1x128xf32>
    %c0_39 = arith.constant 0 : index
    %c0_40 = arith.constant 0 : index
    %41 = vector.load %arg8[%c0_39, %c0_40] : memref<8x128xf32, #tpu.memory_space<vmem>>, vector<8x128xf32>
    %cst_41 = arith.constant dense<0.000000e+00> : vector<1x128xf32>
    %42 = tpu.matmul %38, %41, %cst_41 {dimension_numbers = #tpu.dot_dimension_numbers<[1], [0], [0], [1], [0, 0, 1, 1], [], []>} : vector<1x8xf32>, vector<8x128xf32>, vector<1x128xf32> -> vector<1x128xf32>
    %43 = vector.broadcast %40 : vector<1x128xf32> to vector<32x128xf32>
    %44 = arith.mulf %15, %43 : vector<32x128xf32>
    %45 = vector.broadcast %42 : vector<1x128xf32> to vector<32x128xf32>
    %46 = arith.addf %44, %45 : vector<32x128xf32>
    %cst_42 = arith.constant 0.000000e+00 : f32
    %47 = vector.broadcast %cst_42 : f32 to vector<32x128xf32>
    %48 = arith.maximumf %46, %47 : vector<32x128xf32>
    %49 = vector.shape_cast %48 : vector<32x128xf32> to vector<2x16x128xf32>
    %c0_43 = arith.constant 0 : index
    %c1_44 = arith.constant 1 : index
    %c0_45 = arith.constant 0 : index
    %50 = vector.load %arg10[%c0_43, %c1_44, %c0_45] : memref<2x18x128xf32, #tpu.memory_space<vmem>>, vector<2x16x128xf32>
    tpu.vector_store %arg10[%c0_43, %c1_44, %c0_45], %49 {strides = array<i32>} : memref<2x18x128xf32, #tpu.memory_space<vmem>>, vector<2x16x128xf32>,
    %c0_46 = arith.constant 0 : index
    %c0_47 = arith.constant 0 : index
    %c0_48 = arith.constant 0 : index
    %51 = vector.load %arg10[%c0_46, %c0_47, %c0_48] : memref<2x18x128xf32, #tpu.memory_space<vmem>>, vector<2x16x128xf32>
    %52 = vector.shape_cast %51 : vector<2x16x128xf32> to vector<32x128xf32>
    %c0_49 = arith.constant 0 : index
    %c1_50 = arith.constant 1 : index
    %c0_51 = arith.constant 0 : index
    %53 = vector.load %arg10[%c0_49, %c1_50, %c0_51] : memref<2x18x128xf32, #tpu.memory_space<vmem>>, vector<2x16x128xf32>
    %54 = vector.shape_cast %53 : vector<2x16x128xf32> to vector<32x128xf32>
    %c0_52 = arith.constant 0 : index
    %c2_53 = arith.constant 2 : index
    %c0_54 = arith.constant 0 : index
    %55 = vector.load %arg10[%c0_52, %c2_53, %c0_54] : memref<2x18x128xf32, #tpu.memory_space<vmem>>, vector<2x16x128xf32>
    %56 = vector.shape_cast %55 : vector<2x16x128xf32> to vector<32x128xf32>
    %57 = tpu.concatenate %52, %54, %56 in 1 : vector<32x128xf32>, vector<32x128xf32>, vector<32x128xf32> -> vector<32x384xf32>
    %58 = arith.truncf %57 : vector<32x384xf32> to vector<32x384xbf16>
    %c0_55 = arith.constant 0 : index
    %c0_56 = arith.constant 0 : index
    %59 = vector.load %arg2[%c0_55, %c0_56] : memref<384x128xbf16, #tpu.memory_space<vmem>>, vector<384x128xbf16>
    %cst_57 = arith.constant dense<0.000000e+00> : vector<32x128xf32>
    %60 = tpu.matmul %58, %59, %cst_57 {dimension_numbers = #tpu.dot_dimension_numbers<[1], [0], [0], [1], [0, 0, 1, 1], [], []>} : vector<32x384xbf16>, vector<384x128xbf16>, vector<32x128xf32> -> vector<32x128xf32>
    %cst_58 = arith.constant dense<0.000000e+00> : vector<128xf32>
    %61 = vector.multi_reduction <add>, %60, %cst_58 [0] : vector<32x128xf32> to vector<128xf32>
    %62 = vector.shape_cast %61 : vector<128xf32> to vector<1x128xf32>
    %c0_59 = arith.constant 0 : index
    %c0_60 = arith.constant 0 : index
    %63 = vector.load %arg7[%c0_59, %c0_60] : memref<128x8xf32, #tpu.memory_space<vmem>>, vector<128x8xf32>
    %cst_61 = arith.constant dense<0.000000e+00> : vector<1x8xf32>
    %64 = tpu.matmul %62, %63, %cst_61 {dimension_numbers = #tpu.dot_dimension_numbers<[1], [0], [0], [1], [0, 0, 1, 1], [], []>} : vector<1x128xf32>, vector<128x8xf32>, vector<1x8xf32> -> vector<1x8xf32>
    %65 = arith.mulf %60, %60 : vector<32x128xf32>
    %cst_62 = arith.constant dense<0.000000e+00> : vector<128xf32>
    %66 = vector.multi_reduction <add>, %65, %cst_62 [0] : vector<32x128xf32> to vector<128xf32>
    %67 = vector.shape_cast %66 : vector<128xf32> to vector<1x128xf32>
    %c0_63 = arith.constant 0 : index
    %c0_64 = arith.constant 0 : index
    %68 = vector.load %arg7[%c0_63, %c0_64] : memref<128x8xf32, #tpu.memory_space<vmem>>, vector<128x8xf32>
    %cst_65 = arith.constant dense<0.000000e+00> : vector<1x8xf32>
    %69 = tpu.matmul %67, %68, %cst_65 {dimension_numbers = #tpu.dot_dimension_numbers<[1], [0], [0], [1], [0, 0, 1, 1], [], []>} : vector<1x128xf32>, vector<128x8xf32>, vector<1x8xf32> -> vector<1x8xf32>
    %cst_66 = arith.constant 0.001953125 : f32
    %70 = vector.broadcast %cst_66 : f32 to vector<1x8xf32>
    %71 = arith.mulf %64, %70 : vector<1x8xf32>
    %cst_67 = arith.constant 0.001953125 : f32
    %72 = vector.broadcast %cst_67 : f32 to vector<1x8xf32>
    %73 = arith.mulf %69, %72 : vector<1x8xf32>
    %74 = arith.mulf %71, %71 : vector<1x8xf32>
    %75 = arith.subf %73, %74 : vector<1x8xf32>
    %c0_68 = arith.constant 0 : index
    %c0_69 = arith.constant 0 : index
    %76 = vector.load %arg5[%c0_68, %c0_69] : memref<1x8xf32, #tpu.memory_space<vmem>>, vector<1x8xf32>
    %cst_70 = arith.constant 9.99999974E-6 : f32
    %77 = vector.broadcast %cst_70 : f32 to vector<1x8xf32>
    %78 = arith.addf %75, %77 : vector<1x8xf32>
    %79 = math.rsqrt %78 : vector<1x8xf32>
    %80 = arith.mulf %76, %79 : vector<1x8xf32>
    %c0_71 = arith.constant 0 : index
    %c0_72 = arith.constant 0 : index
    %81 = vector.load %arg6[%c0_71, %c0_72] : memref<1x8xf32, #tpu.memory_space<vmem>>, vector<1x8xf32>
    %82 = arith.mulf %71, %80 : vector<1x8xf32>
    %83 = arith.subf %81, %82 : vector<1x8xf32>
    %c0_73 = arith.constant 0 : index
    %c0_74 = arith.constant 0 : index
    %84 = vector.load %arg8[%c0_73, %c0_74] : memref<8x128xf32, #tpu.memory_space<vmem>>, vector<8x128xf32>
    %cst_75 = arith.constant dense<0.000000e+00> : vector<1x128xf32>
    %85 = tpu.matmul %80, %84, %cst_75 {dimension_numbers = #tpu.dot_dimension_numbers<[1], [0], [0], [1], [0, 0, 1, 1], [], []>} : vector<1x8xf32>, vector<8x128xf32>, vector<1x128xf32> -> vector<1x128xf32>
    %c0_76 = arith.constant 0 : index
    %c0_77 = arith.constant 0 : index
    %86 = vector.load %arg8[%c0_76, %c0_77] : memref<8x128xf32, #tpu.memory_space<vmem>>, vector<8x128xf32>
    %cst_78 = arith.constant dense<0.000000e+00> : vector<1x128xf32>
    %87 = tpu.matmul %83, %86, %cst_78 {dimension_numbers = #tpu.dot_dimension_numbers<[1], [0], [0], [1], [0, 0, 1, 1], [], []>} : vector<1x8xf32>, vector<8x128xf32>, vector<1x128xf32> -> vector<1x128xf32>
    %88 = vector.broadcast %85 : vector<1x128xf32> to vector<32x128xf32>
    %89 = arith.mulf %60, %88 : vector<32x128xf32>
    %90 = vector.broadcast %87 : vector<1x128xf32> to vector<32x128xf32>
    %91 = arith.addf %89, %90 : vector<32x128xf32>
    %92 = vector.shape_cast %91 : vector<32x128xf32> to vector<2x16x128xf32>
    %93 = arith.addf %0, %92 : vector<2x16x128xf32>
    %c0_79 = arith.constant 0 : index
    %c0_80 = arith.constant 0 : index
    %c0_81 = arith.constant 0 : index
    %94 = vector.load %arg9[%c0_79, %c0_80, %c0_81] : memref<2x16x128xf32, #tpu.memory_space<vmem>>, vector<2x16x128xf32>
    tpu.vector_store %arg9[%c0_79, %c0_80, %c0_81], %93 {strides = array<i32>} : memref<2x16x128xf32, #tpu.memory_space<vmem>>, vector<2x16x128xf32>,
    return
  }
}

</mosaic_0001>

<llo_original>
// kernel: tpu_custom_call.1
$region0: #{tpu_custom_call.1}
  #allocation0 [shape = 'u32[]', space=smem, size = 0x4, offset = 0x4, fixed_abs, tag = 'smem constant byte address 0x4 - core index']
  #allocation1 [shape = 'u32[144,128]{1,0:T(1,128)}', space=vmem, size = 0x12000, scoped, tag = 'internal scratch']
  #allocation2 [shape = 'f32[2,18,128]{2,1,0:T(8,128)}', space=vmem, size = 0x6000, scoped, tag = 'scratch operand']
  %s0 = inlined_call_operand.vmem [shape: f32[2,16,128], index: 0, kind: input, shape index: {}]
  %s1 = inlined_call_operand.hbm [shape: bf16[384,128], index: 1, kind: input, shape index: {}]
  %s2 = inlined_call_operand.hbm [shape: bf16[384,128], index: 2, kind: input, shape index: {}]
  %s3 = inlined_call_operand.vmem [shape: f32[1,8], index: 3, kind: input, shape index: {}]
  %s4 = inlined_call_operand.vmem [shape: f32[1,8], index: 4, kind: input, shape index: {}]
  %s5 = inlined_call_operand.vmem [shape: f32[1,8], index: 5, kind: input, shape index: {}]
  %s6 = inlined_call_operand.vmem [shape: f32[1,8], index: 6, kind: input, shape index: {}]
  %s7 = inlined_call_operand.vmem [shape: f32[128,8], index: 7, kind: input, shape index: {}]
  %s8 = inlined_call_operand.vmem [shape: f32[8,128], index: 8, kind: input, shape index: {}]
  %s9 = inlined_call_operand.hbm [shape: f32[2,16,128], index: 9, kind: output, shape index: {}]
  %s10 = sld [smem:[#allocation0]]
  $region54: #{tpu_custom_call.1} parent=0
    _
  %s12 = ssub.s32 1, %s10
  %s13 = scalar_select 0, %s12, %s10
  $region1: #{tpu_custom_call.1} parent=0
    #allocation3 [shape = 'u8[98304]{0}', space=vmem, size = 0x18000, scoped, tag = 'input window, operand 1, single buffered']
    #allocation4 [shape = 's32[1]{0}', space=sflag, size = 0x4, scoped, tag = 'scoped memory for tpu_custom_call.1']
    #allocation5 [shape = 's32[1]{0}', space=sflag, size = 0x4, scoped, tag = 'scoped memory for tpu_custom_call.1']
    #allocation6 [shape = 'u8[98304]{0}', space=vmem, size = 0x18000, scoped, tag = 'input window, operand 2, single buffered']
    #allocation7 [shape = 's32[1]{0}', space=sflag, size = 0x4, scoped, tag = 'scoped memory for tpu_custom_call.1']
    #allocation8 [shape = 'u8[16384]{0}', space=vmem, size = 0x4000, scoped, tag = 'output window, operand 0, single buffered']
    %14 = vsyncpa [#allocation4], 0
    %15 = vsyncpa [#allocation7], 0
    %16 = vsyncpa [#allocation5], 0
    // Predicated region
    $region2: #{tpu_custom_call.1} parent=1 // pred_check
      _
    $region3: #{tpu_custom_call.1} parent=1 // pred_check_branch
      %18 = sbr.rel (0) target = $region5
    $region4: #{tpu_custom_call.1} parent=1 // pred_region
      _
    $region5: #{tpu_custom_call.1} parent=1 // pred_fallthru
      _
    // Predicated region
    $region6: #{tpu_custom_call.1} parent=1 // pred_check
      _
    $region7: #{tpu_custom_call.1} parent=1 // pred_check_branch
      %20 = sbr.rel (0) target = $region9
    $region8: #{tpu_custom_call.1} parent=1 // pred_region
      %s22 = ssub.s32 3072, 3072
      %23 = vsyncadd [#allocation4], %s22
      %s24 = sshll.u32 [#allocation3], 4
      %s25 = int_to_ptr.vmem [resolvable:$true] %s24
      %30 = dma.hbm_to_vmem [thread:$0]  %s1, 3072, %s25, [#allocation4], 64, 64, 4
    $region9: #{tpu_custom_call.1} parent=1 // pred_fallthru
      _
    // Predicated region
    $region10: #{tpu_custom_call.1} parent=1 // pred_check
      _
    $region11: #{tpu_custom_call.1} parent=1 // pred_check_branch
      %32 = sbr.rel (0) target = $region13
    $region12: #{tpu_custom_call.1} parent=1 // pred_region
      %s34 = ssub.s32 3072, 3072
      %35 = vsyncadd [#allocation7], %s34
      %s36 = sshll.u32 [#allocation6], 4
      %s37 = int_to_ptr.vmem [resolvable:$true] %s36
      %42 = dma.hbm_to_vmem [thread:$0]  %s2, 3072, %s37, [#allocation7], 64, 64, 4
    $region13: #{tpu_custom_call.1} parent=1 // pred_fallthru
      _
    // Predicated region
    $region14: #{tpu_custom_call.1} parent=1 // pred_check
      _
    $region15: #{tpu_custom_call.1} parent=1 // pred_check_branch
      %44 = sbr.rel (0) target = $region17
    $region16: #{tpu_custom_call.1} parent=1 // pred_region
      _
    $region17: #{tpu_custom_call.1} parent=1 // pred_fallthru
      _
    // Predicated region
    $region18: #{tpu_custom_call.1} parent=1 // pred_check
      _
    $region19: #{tpu_custom_call.1} parent=1 // pred_check_branch
      %46 = sbr.rel (0) target = $region21
    $region20: #{tpu_custom_call.1} parent=1 // pred_region
      _
    $region21: #{tpu_custom_call.1} parent=1 // pred_fallthru
      _
    // Predicated region
    $region22: #{tpu_custom_call.1} parent=1 // pred_check
      _
    $region23: #{tpu_custom_call.1} parent=1 // pred_check_branch
      %48 = sbr.rel (0) target = $region25
    $region24: #{tpu_custom_call.1} parent=1 // pred_region
      _
    $region25: #{tpu_custom_call.1} parent=1 // pred_fallthru
      _
    // Predicated region
    $region26: #{tpu_custom_call.1} parent=1 // pred_check
      _
    $region27: #{tpu_custom_call.1} parent=1 // pred_check_branch
      %50 = sbr.rel (0) target = $region29
    $region28: #{tpu_custom_call.1} parent=1 // pred_region
      _
    $region29: #{tpu_custom_call.1} parent=1 // pred_fallthru
      _
    // Predicated region
    $region30: #{tpu_custom_call.1} parent=1 // pred_check
      _
    $region31: #{tpu_custom_call.1} parent=1 // pred_check_branch
      %52 = sbr.rel (0) target = $region33
    $region32: #{tpu_custom_call.1} parent=1 // pred_region
      _
    $region33: #{tpu_custom_call.1} parent=1 // pred_fallthru
      _
    // Predicated region
    $region34: #{tpu_custom_call.1} parent=1 // pred_check
      _
    $region35: #{tpu_custom_call.1} parent=1 // pred_check_branch
      %54 = sbr.rel (0) target = $region37
    $region36: #{tpu_custom_call.1} parent=1 // pred_region
      _
    $region37: #{tpu_custom_call.1} parent=1 // pred_fallthru
      _
    // Predicated region
    $region38: #{tpu_custom_call.1} parent=1 // pred_check
      _
    $region39: #{tpu_custom_call.1} parent=1 // pred_check_branch
      %56 = sbr.rel (0) target = $region41
    $region40: #{tpu_custom_call.1} parent=1 // pred_region
      %57 = dma.done [#allocation4], 3072
    $region41: #{tpu_custom_call.1} parent=1 // pred_fallthru
      _
    // Predicated region
    $region42: #{tpu_custom_call.1} parent=1 // pred_check
      _
    $region43: #{tpu_custom_call.1} parent=1 // pred_check_branch
      %59 = sbr.rel (0) target = $region45
    $region44: #{tpu_custom_call.1} parent=1 // pred_region
      %60 = dma.done [#allocation7], 3072
    $region45: #{tpu_custom_call.1} parent=1 // pred_fallthru
      _
    %v62 = vld [vmem:[%s0] sm:$0xff]
    %v63 = vld [vmem:[%s0 + $0x8] sm:$0xff]
    %v64 = vld [vmem:[%s0 + $0x10] sm:$0xff]
    %v65 = vld [vmem:[%s0 + $0x18] sm:$0xff]
    %66 = vst [vmem:[#allocation2] sm:$0x1] 0.0
    %67 = vst [vmem:[#allocation2 + $0x18] sm:$0x1] 0.0
    %68 = vst [vmem:[#allocation2 + $0x11] sm:$0x1] 0.0
    %69 = vst [vmem:[#allocation2 + $0x29] sm:$0x1] 0.0
    %70 = vst [vmem:[#allocation2 + $0x1] sm:$0xff] %v62
    %71 = vst [vmem:[#allocation2 + $0x9] sm:$0xff] %v63
    %72 = vst [vmem:[#allocation2 + $0x19] sm:$0xff] %v64
    %73 = vst [vmem:[#allocation2 + $0x21] sm:$0xff] %v65
    %v74 = vld [vmem:[#allocation2] sm:$0xff]
    %v75 = vld [vmem:[#allocation2 + $0x8] sm:$0xff]
    %v76 = vld [vmem:[#allocation2 + $0x18] sm:$0xff]
    %v77 = vld [vmem:[#allocation2 + $0x20] sm:$0xff]
    %v78 = vld [vmem:[#allocation2 + $0x1] sm:$0xff]
    %v79 = vld [vmem:[#allocation2 + $0x9] sm:$0xff]
    %v80 = vld [vmem:[#allocation2 + $0x19] sm:$0xff]
    %v81 = vld [vmem:[#allocation2 + $0x21] sm:$0xff]
    %v82 = vld [vmem:[#allocation2 + $0x2] sm:$0xff]
    %v83 = vld [vmem:[#allocation2 + $0xa] sm:$0xff]
    %v84 = vld [vmem:[#allocation2 + $0x1a] sm:$0xff]
    %v85 = vld [vmem:[#allocation2 + $0x22] sm:$0xff]
    %v86 = vpack.c.bf16 %v75, %v74
    %v87 = vpack.c.bf16 %v79, %v78
    %v88 = vpack.c.bf16 %v83, %v82
    %v89 = vpack.c.bf16 %v77, %v76
    %v90 = vpack.c.bf16 %v81, %v80
    %v91 = vpack.c.bf16 %v85, %v84
    %v92 = vld [vmem:[#allocation3] sm:$0xf]
    %v93 = vld [vmem:[#allocation3 + $0x4] sm:$0xf]
    %v94 = vld [vmem:[#allocation3 + $0x8] sm:$0xf]
    %v95 = vld [vmem:[#allocation3 + $0xc] sm:$0xf]
    %v96 = vld [vmem:[#allocation3 + $0x10] sm:$0xf]
    %v97 = vld [vmem:[#allocation3 + $0x14] sm:$0xf]
    %v98 = vld [vmem:[#allocation3 + $0x18] sm:$0xf]
    %v99 = vld [vmem:[#allocation3 + $0x1c] sm:$0xf]
    %v100 = vld [vmem:[#allocation3 + $0x20] sm:$0xf]
    %v101 = vld [vmem:[#allocation3 + $0x24] sm:$0xf]
    %v102 = vld [vmem:[#allocation3 + $0x28] sm:$0xf]
    %v103 = vld [vmem:[#allocation3 + $0x2c] sm:$0xf]
    %v104 = vld [vmem:[#allocation3 + $0x30] sm:$0xf]
    %v105 = vld [vmem:[#allocation3 + $0x34] sm:$0xf]
    %v106 = vld [vmem:[#allocation3 + $0x38] sm:$0xf]
    %v107 = vld [vmem:[#allocation3 + $0x3c] sm:$0xf]
    %v108 = vld [vmem:[#allocation3 + $0x40] sm:$0xf]
    %v109 = vld [vmem:[#allocation3 + $0x44] sm:$0xf]
    %v110 = vld [vmem:[#allocation3 + $0x48] sm:$0xf]
    %v111 = vld [vmem:[#allocation3 + $0x4c] sm:$0xf]
    %v112 = vld [vmem:[#allocation3 + $0x50] sm:$0xf]
    %v113 = vld [vmem:[#allocation3 + $0x54] sm:$0xf]
    %v114 = vld [vmem:[#allocation3 + $0x58] sm:$0xf]
    %v115 = vld [vmem:[#allocation3 + $0x5c] sm:$0xf]
    %v116 = vld [vmem:[#allocation3 + $0x60] sm:$0xf]
    %v117 = vld [vmem:[#allocation3 + $0x64] sm:$0xf]
    %v118 = vld [vmem:[#allocation3 + $0x68] sm:$0xf]
    %v119 = vld [vmem:[#allocation3 + $0x6c] sm:$0xf]
    %v120 = vld [vmem:[#allocation3 + $0x70] sm:$0xf]
    %v121 = vld [vmem:[#allocation3 + $0x74] sm:$0xf]
    %v122 = vld [vmem:[#allocation3 + $0x78] sm:$0xf]
    %v123 = vld [vmem:[#allocation3 + $0x7c] sm:$0xf]
    %v124 = vld [vmem:[#allocation3 + $0x80] sm:$0xf]
    %v125 = vld [vmem:[#allocation3 + $0x84] sm:$0xf]
    %v126 = vld [vmem:[#allocation3 + $0x88] sm:$0xf]
    %v127 = vld [vmem:[#allocation3 + $0x8c] sm:$0xf]
    %v128 = vld [vmem:[#allocation3 + $0x90] sm:$0xf]
    %v129 = vld [vmem:[#allocation3 + $0x94] sm:$0xf]
    %v130 = vld [vmem:[#allocation3 + $0x98] sm:$0xf]
    %v131 = vld [vmem:[#allocation3 + $0x9c] sm:$0xf]
    %v132 = vld [vmem:[#allocation3 + $0xa0] sm:$0xf]
    %v133 = vld [vmem:[#allocation3 + $0xa4] sm:$0xf]
    %v134 = vld [vmem:[#allocation3 + $0xa8] sm:$0xf]
    %v135 = vld [vmem:[#allocation3 + $0xac] sm:$0xf]
    %v136 = vld [vmem:[#allocation3 + $0xb0] sm:$0xf]
    %v137 = vld [vmem:[#allocation3 + $0xb4] sm:$0xf]
    %v138 = vld [vmem:[#allocation3 + $0xb8] sm:$0xf]
    %v139 = vld [vmem:[#allocation3 + $0xbc] sm:$0xf]
    %v188 = vunpack.c.l.b16 %v92
    %v189 = vunpack.c.l.b16 %v93
    %v190 = vunpack.c.l.b16 %v94
    %v191 = vunpack.c.l.b16 %v95
    %v192 = vunpack.c.l.b16 %v96
    %v193 = vunpack.c.l.b16 %v97
    %v194 = vunpack.c.l.b16 %v98
    %v195 = vunpack.c.l.b16 %v99
    %v196 = vunpack.c.l.b16 %v100
    %v197 = vunpack.c.l.b16 %v101
    %v198 = vunpack.c.l.b16 %v102
    %v199 = vunpack.c.l.b16 %v103
    %v200 = vunpack.c.l.b16 %v104
    %v201 = vunpack.c.l.b16 %v105
    %v202 = vunpack.c.l.b16 %v106
    %v203 = vunpack.c.l.b16 %v107
    %v204 = vunpack.c.l.b16 %v108
    %v205 = vunpack.c.l.b16 %v109
    %v206 = vunpack.c.l.b16 %v110
    %v207 = vunpack.c.l.b16 %v111
    %v208 = vunpack.c.l.b16 %v112
    %v209 = vunpack.c.l.b16 %v113
    %v210 = vunpack.c.l.b16 %v114
    %v211 = vunpack.c.l.b16 %v115
    %v212 = vunpack.c.l.b16 %v116
    %v213 = vunpack.c.l.b16 %v117
    %v214 = vunpack.c.l.b16 %v118
    %v215 = vunpack.c.l.b16 %v119
    %v216 = vunpack.c.l.b16 %v120
    %v217 = vunpack.c.l.b16 %v121
    %v218 = vunpack.c.l.b16 %v122
    %v219 = vunpack.c.l.b16 %v123
    %v220 = vunpack.c.l.b16 %v124
    %v221 = vunpack.c.l.b16 %v125
    %v222 = vunpack.c.l.b16 %v126
    %v223 = vunpack.c.l.b16 %v127
    %v224 = vunpack.c.l.b16 %v128
    %v225 = vunpack.c.l.b16 %v129
    %v226 = vunpack.c.l.b16 %v130
    %v227 = vunpack.c.l.b16 %v131
    %v228 = vunpack.c.l.b16 %v132
    %v229 = vunpack.c.l.b16 %v133
    %v230 = vunpack.c.l.b16 %v134
    %v231 = vunpack.c.l.b16 %v135
    %v232 = vunpack.c.l.b16 %v136
    %v233 = vunpack.c.l.b16 %v137
    %v234 = vunpack.c.l.b16 %v138
    %v235 = vunpack.c.l.b16 %v139
    %v236 = vpack.c.b16 %v189, %v188
    %v237 = vpack.c.b16 %v191, %v190
    %v238 = vpack.c.b16 %v193, %v192
    %v239 = vpack.c.b16 %v195, %v194
    %v240 = vpack.c.b16 %v197, %v196
    %v241 = vpack.c.b16 %v199, %v198
    %v242 = vpack.c.b16 %v201, %v200
    %v243 = vpack.c.b16 %v203, %v202
    %v244 = vpack.c.b16 %v205, %v204
    %v245 = vpack.c.b16 %v207, %v206
    %v246 = vpack.c.b16 %v209, %v208
    %v247 = vpack.c.b16 %v211, %v210
    %v248 = vpack.c.b16 %v213, %v212
    %v249 = vpack.c.b16 %v215, %v214
    %v250 = vpack.c.b16 %v217, %v216
    %v251 = vpack.c.b16 %v219, %v218
    %v252 = vpack.c.b16 %v221, %v220
    %v253 = vpack.c.b16 %v223, %v222
    %v254 = vpack.c.b16 %v225, %v224
    %v255 = vpack.c.b16 %v227, %v226
    %v256 = vpack.c.b16 %v229, %v228
    %v257 = vpack.c.b16 %v231, %v230
    %v258 = vpack.c.b16 %v233, %v232
    %v259 = vpack.c.b16 %v235, %v234
    %284 = vmatprep.subr.bf16.mxu0 0
    %285 = vmatpush1.bf16.msra.mxu0 %v236
    %286 = vmatprep.subr.bf16.mxu0 0
    %287 = vmatpush1.bf16.msra.mxu0 %v237
    %288 = vmatprep.subr.bf16.mxu0 0
    %289 = vmatpush1.bf16.msra.mxu0 %v238
    %290 = vmatprep.subr.bf16.mxu0 0
    %291 = vmatpush1.bf16.msra.mxu0 %v239
    %292 = vmatprep.subr.bf16.mxu0 0
    %293 = vmatpush1.bf16.msra.mxu0 %v240
    %294 = vmatprep.subr.bf16.mxu0 0
    %295 = vmatpush1.bf16.msra.mxu0 %v241
    %296 = vmatprep.subr.bf16.mxu0 0
    %297 = vmatpush1.bf16.msra.mxu0 %v242
    %298 = vmatprep.subr.bf16.mxu0 0
    %299 = vmatpush1.bf16.msra.mxu0 %v243
    %300 = vmatprep.subr.bf16.mxu0 0
    %301 = vmatpush1.bf16.msra.mxu0 %v244
    %302 = vmatprep.subr.bf16.mxu0 0
    %303 = vmatpush1.bf16.msra.mxu0 %v245
    %304 = vmatprep.subr.bf16.mxu0 0
    %305 = vmatpush1.bf16.msra.mxu0 %v246
    %306 = vmatprep.subr.bf16.mxu0 0
    %307 = vmatpush1.bf16.msra.mxu0 %v247
    %308 = vmatprep.subr.bf16.mxu0 0
    %309 = vmatpush1.bf16.msra.mxu0 %v248
    %310 = vmatprep.subr.bf16.mxu0 0
    %311 = vmatpush1.bf16.msra.mxu0 %v249
    %312 = vmatprep.subr.bf16.mxu0 0
    %313 = vmatpush1.bf16.msra.mxu0 %v250
    %314 = vmatprep.subr.bf16.mxu0 0
    %315 = vmatpush1.bf16.msra.mxu0 %v251
    %316 = vmatprep.mubr.bf16.mxu0 %v87
    %317 = vmatmul.mubr.bf16.gmra.mrb[0].mxu0 %v86
    %v318 = vpop.f32.mrb[0].mxu0
    %v319 = vadd.f32 0.0, %v318
    %v320 = vpop.f32.mrb[0].mxu0
    %v321 = vpop.f32.mrb[0].mxu0
    %v322 = vadd.f32 0.0, %v321
    %v323 = vpop.f32.mrb[0].mxu0
    %324 = vmatprep.mubr.bf16.mxu0 %v90
    %325 = vmatmul.mubr.bf16.gmra.mrb[0].mxu0 %v89
    %v326 = vpop.f32.mrb[0].mxu0
    %v327 = vadd.f32 0.0, %v326
    %v328 = vpop.f32.mrb[0].mxu0
    %v329 = vpop.f32.mrb[0].mxu0
    %v330 = vadd.f32 0.0, %v329
    %v331 = vpop.f32.mrb[0].mxu0
    %332 = vdwg.mxu0
    %333 = vmatprep.subr.bf16.mxu0 0
    %334 = vmatpush1.bf16.msra.mxu0 %v252
    %335 = vmatprep.subr.bf16.mxu0 0
    %336 = vmatpush1.bf16.msra.mxu0 %v253
    %337 = vmatprep.subr.bf16.mxu0 0
    %338 = vmatpush1.bf16.msra.mxu0 %v254
    %339 = vmatprep.subr.bf16.mxu0 0
    %340 = vmatpush1.bf16.msra.mxu0 %v255
    %341 = vmatprep.subr.bf16.mxu0 0
    %342 = vmatpush1.bf16.msra.mxu0 %v256
    %343 = vmatprep.subr.bf16.mxu0 0
    %344 = vmatpush1.bf16.msra.mxu0 %v257
    %345 = vmatprep.subr.bf16.mxu0 0
    %346 = vmatpush1.bf16.msra.mxu0 %v258
    %347 = vmatprep.subr.bf16.mxu0 0
    %348 = vmatpush1.bf16.msra.mxu0 %v259
    %349 = vmatprep.subr.bf16.mxu0 0
    %350 = vmatpush1.bf16.msra.mxu0 0
    %351 = vmatprep.subr.bf16.mxu0 0
    %352 = vmatpush1.bf16.msra.mxu0 0
    %353 = vmatprep.subr.bf16.mxu0 0
    %354 = vmatpush1.bf16.msra.mxu0 0
    %355 = vmatprep.subr.bf16.mxu0 0
    %356 = vmatpush1.bf16.msra.mxu0 0
    %357 = vmatprep.subr.bf16.mxu0 0
    %358 = vmatpush1.bf16.msra.mxu0 0
    %359 = vmatprep.subr.bf16.mxu0 0
    %360 = vmatpush1.bf16.msra.mxu0 0
    %361 = vmatprep.subr.bf16.mxu0 0
    %362 = vmatpush1.bf16.msra.mxu0 0
    %363 = vmatprep.subr.bf16.mxu0 0
    %364 = vmatpush1.bf16.msra.mxu0 0
    %365 = vmatprep.mubr.bf16.mxu0 0
    %366 = vmatmul.mubr.bf16.gmra.mrb[0].mxu0 %v88
    %v367 = vpop.f32.mrb[0].mxu0
    %v368 = vadd.f32 %v319, %v367
    %v369 = vpop.f32.mrb[0].mxu0
    %v370 = vpop.f32.mrb[0].mxu0
    %v371 = vadd.f32 %v322, %v370
    %v372 = vpop.f32.mrb[0].mxu0
    %373 = vmatprep.mubr.bf16.mxu0 0
    %374 = vmatmul.mubr.bf16.gmra.mrb[0].mxu0 %v91
    %v375 = vpop.f32.mrb[0].mxu0
    %v376 = vadd.f32 %v327, %v375
    %v377 = vpop.f32.mrb[0].mxu0
    %v378 = vpop.f32.mrb[0].mxu0
    %v379 = vadd.f32 %v330, %v378
    %v380 = vpop.f32.mrb[0].mxu0
    %381 = vdwg.mxu0
    %v382 = vadd.f32 %v368, %v371
    %v383 = vadd.f32 %v382, %v376
    %v384 = vadd.f32 %v383, %v379
    %v385 = vrot.slane %v384, 4
    %v386 = vadd.f32 %v384, %v385
    %v387 = vrot.slane %v386, 2
    %v388 = vadd.f32 %v386, %v387
    %v389 = vrot.slane %v388, 1
    %v390 = vadd.f32 %v388, %v389
    %v391 = vld [vmem:[%s7] sm:$0xff]
    %v392 = vld [vmem:[%s7 + $0x8] sm:$0xff]
    %v393 = vld [vmem:[%s7 + $0x10] sm:$0xff]
    %v394 = vld [vmem:[%s7 + $0x18] sm:$0xff]
    %v395 = vld [vmem:[%s7 + $0x20] sm:$0xff]
    %v396 = vld [vmem:[%s7 + $0x28] sm:$0xff]
    %v397 = vld [vmem:[%s7 + $0x30] sm:$0xff]
    %v398 = vld [vmem:[%s7 + $0x38] sm:$0xff]
    %v399 = vld [vmem:[%s7 + $0x40] sm:$0xff]
    %v400 = vld [vmem:[%s7 + $0x48] sm:$0xff]
    %v401 = vld [vmem:[%s7 + $0x50] sm:$0xff]
    %v402 = vld [vmem:[%s7 + $0x58] sm:$0xff]
    %v403 = vld [vmem:[%s7 + $0x60] sm:$0xff]
    %v404 = vld [vmem:[%s7 + $0x68] sm:$0xff]
    %v405 = vld [vmem:[%s7 + $0x70] sm:$0xff]
    %v406 = vld [vmem:[%s7 + $0x78] sm:$0xff]
    %407 = vmatprep.subr.mxu0 0.0
    %408 = vmatpush1.msra.mxu0 %v391
    %409 = vmatprep.subr.mxu0 0.0
    %410 = vmatpush1.msra.mxu0 %v392
    %411 = vmatprep.subr.mxu0 0.0
    %412 = vmatpush1.msra.mxu0 %v393
    %413 = vmatprep.subr.mxu0 0.0
    %414 = vmatpush1.msra.mxu0 %v394
    %415 = vmatprep.subr.mxu0 0.0
    %416 = vmatpush1.msra.mxu0 %v395
    %417 = vmatprep.subr.mxu0 0.0
    %418 = vmatpush1.msra.mxu0 %v396
    %419 = vmatprep.subr.mxu0 0.0
    %420 = vmatpush1.msra.mxu0 %v397
    %421 = vmatprep.subr.mxu0 0.0
    %422 = vmatpush1.msra.mxu0 %v398
    %423 = vmatprep.subr.mxu0 0.0
    %424 = vmatpush1.msra.mxu0 %v399
    %425 = vmatprep.subr.mxu0 0.0
    %426 = vmatpush1.msra.mxu0 %v400
    %427 = vmatprep.subr.mxu0 0.0
    %428 = vmatpush1.msra.mxu0 %v401
    %429 = vmatprep.subr.mxu0 0.0
    %430 = vmatpush1.msra.mxu0 %v402
    %431 = vmatprep.subr.mxu0 0.0
    %432 = vmatpush1.msra.mxu0 %v403
    %433 = vmatprep.subr.mxu0 0.0
    %434 = vmatpush1.msra.mxu0 %v404
    %435 = vmatprep.subr.mxu0 0.0
    %436 = vmatpush1.msra.mxu0 %v405
    %437 = vmatprep.subr.mxu0 0.0
    %438 = vmatpush1.msra.mxu0 %v406
    %439 = vmatprep.subr.mxu0 0.0
    %440 = vmatpush1.msra.mxu0 0.0
    %441 = vmatprep.subr.mxu0 0.0
    %442 = vmatpush1.msra.mxu0 0.0
    %443 = vmatprep.subr.mxu0 0.0
    %444 = vmatpush1.msra.mxu0 0.0
    %445 = vmatprep.subr.mxu0 0.0
    %446 = vmatpush1.msra.mxu0 0.0
    %447 = vmatprep.subr.mxu0 0.0
    %448 = vmatpush1.msra.mxu0 0.0
    %449 = vmatprep.subr.mxu0 0.0
    %450 = vmatpush1.msra.mxu0 0.0
    %451 = vmatprep.subr.mxu0 0.0
    %452 = vmatpush1.msra.mxu0 0.0
    %453 = vmatprep.subr.mxu0 0.0
    %454 = vmatpush1.msra.mxu0 0.0
    %455 = vmatprep.subr.mxu0 0.0
    %456 = vmatpush1.msra.mxu0 0.0
    %457 = vmatprep.subr.mxu0 0.0
    %458 = vmatpush1.msra.mxu0 0.0
    %459 = vmatprep.subr.mxu0 0.0
    %460 = vmatpush1.msra.mxu0 0.0
    %461 = vmatprep.subr.mxu0 0.0
    %462 = vmatpush1.msra.mxu0 0.0
    %463 = vmatprep.subr.mxu0 0.0
    %464 = vmatpush1.msra.mxu0 0.0
    %465 = vmatprep.subr.mxu0 0.0
    %466 = vmatpush1.msra.mxu0 0.0
    %467 = vmatprep.subr.mxu0 0.0
    %468 = vmatpush1.msra.mxu0 0.0
    %469 = vmatprep.subr.mxu0 0.0
    %470 = vmatpush1.msra.mxu0 0.0
    %471 = vmatprep.mubr.f32.mxu0 0.0
    %472 = vmatmul.mubr.f32.gmra.mrb[0].mxu0 %v390
    %v473 = vpop.f32.mrb[0].mxu0
    %v474 = vadd.f32 0.0, %v473
    %v475 = vpop.f32.mrb[0].mxu0
    %476 = vdwg.mxu0
    %v477 = vmul.f32 %v368, %v368
    %v478 = vmul.f32 %v371, %v371
    %v479 = vmul.f32 %v376, %v376
    %v480 = vmul.f32 %v379, %v379
    %v481 = vadd.f32 %v477, %v478
    %v482 = vadd.f32 %v481, %v479
    %v483 = vadd.f32 %v482, %v480
    %v484 = vrot.slane %v483, 4
    %v485 = vadd.f32 %v483, %v484
    %v486 = vrot.slane %v485, 2
    %v487 = vadd.f32 %v485, %v486
    %v488 = vrot.slane %v487, 1
    %v489 = vadd.f32 %v487, %v488
    %490 = vmatprep.subr.mxu0 0.0
    %491 = vmatpush1.msra.mxu0 %v391
    %492 = vmatprep.subr.mxu0 0.0
    %493 = vmatpush1.msra.mxu0 %v392
    %494 = vmatprep.subr.mxu0 0.0
    %495 = vmatpush1.msra.mxu0 %v393
    %496 = vmatprep.subr.mxu0 0.0
    %497 = vmatpush1.msra.mxu0 %v394
    %498 = vmatprep.subr.mxu0 0.0
    %499 = vmatpush1.msra.mxu0 %v395
    %500 = vmatprep.subr.mxu0 0.0
    %501 = vmatpush1.msra.mxu0 %v396
    %502 = vmatprep.subr.mxu0 0.0
    %503 = vmatpush1.msra.mxu0 %v397
    %504 = vmatprep.subr.mxu0 0.0
    %505 = vmatpush1.msra.mxu0 %v398
    %506 = vmatprep.subr.mxu0 0.0
    %507 = vmatpush1.msra.mxu0 %v399
    %508 = vmatprep.subr.mxu0 0.0
    %509 = vmatpush1.msra.mxu0 %v400
    %510 = vmatprep.subr.mxu0 0.0
    %511 = vmatpush1.msra.mxu0 %v401
    %512 = vmatprep.subr.mxu0 0.0
    %513 = vmatpush1.msra.mxu0 %v402
    %514 = vmatprep.subr.mxu0 0.0
    %515 = vmatpush1.msra.mxu0 %v403
    %516 = vmatprep.subr.mxu0 0.0
    %517 = vmatpush1.msra.mxu0 %v404
    %518 = vmatprep.subr.mxu0 0.0
    %519 = vmatpush1.msra.mxu0 %v405
    %520 = vmatprep.subr.mxu0 0.0
    %521 = vmatpush1.msra.mxu0 %v406
    %522 = vmatprep.subr.mxu0 0.0
    %523 = vmatpush1.msra.mxu0 0.0
    %524 = vmatprep.subr.mxu0 0.0
    %525 = vmatpush1.msra.mxu0 0.0
    %526 = vmatprep.subr.mxu0 0.0
    %527 = vmatpush1.msra.mxu0 0.0
    %528 = vmatprep.subr.mxu0 0.0
    %529 = vmatpush1.msra.mxu0 0.0
    %530 = vmatprep.subr.mxu0 0.0
    %531 = vmatpush1.msra.mxu0 0.0
    %532 = vmatprep.subr.mxu0 0.0
    %533 = vmatpush1.msra.mxu0 0.0
    %534 = vmatprep.subr.mxu0 0.0
    %535 = vmatpush1.msra.mxu0 0.0
    %536 = vmatprep.subr.mxu0 0.0
    %537 = vmatpush1.msra.mxu0 0.0
    %538 = vmatprep.subr.mxu0 0.0
    %539 = vmatpush1.msra.mxu0 0.0
    %540 = vmatprep.subr.mxu0 0.0
    %541 = vmatpush1.msra.mxu0 0.0
    %542 = vmatprep.subr.mxu0 0.0
    %543 = vmatpush1.msra.mxu0 0.0
    %544 = vmatprep.subr.mxu0 0.0
    %545 = vmatpush1.msra.mxu0 0.0
    %546 = vmatprep.subr.mxu0 0.0
    %547 = vmatpush1.msra.mxu0 0.0
    %548 = vmatprep.subr.mxu0 0.0
    %549 = vmatpush1.msra.mxu0 0.0
    %550 = vmatprep.subr.mxu0 0.0
    %551 = vmatpush1.msra.mxu0 0.0
    %552 = vmatprep.subr.mxu0 0.0
    %553 = vmatpush1.msra.mxu0 0.0
    %554 = vmatprep.mubr.f32.mxu0 0.0
    %555 = vmatmul.mubr.f32.gmra.mrb[0].mxu0 %v489
    %v556 = vpop.f32.mrb[0].mxu0
    %v557 = vadd.f32 0.0, %v556
    %v558 = vpop.f32.mrb[0].mxu0
    %559 = vdwg.mxu0
    %v560 = vmul.f32 %v474, 0.001953125
    %v561 = vmul.f32 %v557, 0.001953125
    %v562 = vmul.f32 %v560, %v560
    %v563 = vsub.f32 %v561, %v562
    %v564 = vld [vmem:[%s3] sm:$0x1]
    %v565 = vadd.f32 %v563, 1e-05
    %v566 = vrsqrt.pop %v565
    %v567 = vmul.f32 %v564, %v566
    %v568 = vld [vmem:[%s4] sm:$0x1]
    %v569 = vmul.f32 %v560, %v567
    %v570 = vsub.f32 %v568, %v569
    %v571 = vld [vmem:[%s8] sm:$0xff]
    %vm572 = vcmask 64512
    %v574 = vsel %vm572, %v567, 0
    %576 = vmatprep.subr.mxu0 0.0
    %577 = vmatpush1.msra.mxu0 %v571
    %578 = vmatprep.subr.mxu0 0.0
    %579 = vmatpush1.msra.mxu0 0.0
    %580 = vmatprep.subr.mxu0 0.0
    %581 = vmatpush1.msra.mxu0 0.0
    %582 = vmatprep.subr.mxu0 0.0
    %583 = vmatpush1.msra.mxu0 0.0
    %584 = vmatprep.subr.mxu0 0.0
    %585 = vmatpush1.msra.mxu0 0.0
    %586 = vmatprep.subr.mxu0 0.0
    %587 = vmatpush1.msra.mxu0 0.0
    %588 = vmatprep.subr.mxu0 0.0
    %589 = vmatpush1.msra.mxu0 0.0
    %590 = vmatprep.subr.mxu0 0.0
    %591 = vmatpush1.msra.mxu0 0.0
    %592 = vmatprep.subr.mxu0 0.0
    %593 = vmatpush1.msra.mxu0 0.0
    %594 = vmatprep.subr.mxu0 0.0
    %595 = vmatpush1.msra.mxu0 0.0
    %596 = vmatprep.subr.mxu0 0.0
    %597 = vmatpush1.msra.mxu0 0.0
    %598 = vmatprep.subr.mxu0 0.0
    %599 = vmatpush1.msra.mxu0 0.0
    %600 = vmatprep.subr.mxu0 0.0
    %601 = vmatpush1.msra.mxu0 0.0
    %602 = vmatprep.subr.mxu0 0.0
    %603 = vmatpush1.msra.mxu0 0.0
    %604 = vmatprep.subr.mxu0 0.0
    %605 = vmatpush1.msra.mxu0 0.0
    %606 = vmatprep.subr.mxu0 0.0
    %607 = vmatpush1.msra.mxu0 0.0
    %608 = vmatprep.subr.mxu0 0.0
    %609 = vmatpush1.msra.mxu0 0.0
    %610 = vmatprep.subr.mxu0 0.0
    %611 = vmatpush1.msra.mxu0 0.0
    %612 = vmatprep.subr.mxu0 0.0
    %613 = vmatpush1.msra.mxu0 0.0
    %614 = vmatprep.subr.mxu0 0.0
    %615 = vmatpush1.msra.mxu0 0.0
    %616 = vmatprep.subr.mxu0 0.0
    %617 = vmatpush1.msra.mxu0 0.0
    %618 = vmatprep.subr.mxu0 0.0
    %619 = vmatpush1.msra.mxu0 0.0
    %620 = vmatprep.subr.mxu0 0.0
    %621 = vmatpush1.msra.mxu0 0.0
    %622 = vmatprep.subr.mxu0 0.0
    %623 = vmatpush1.msra.mxu0 0.0
    %624 = vmatprep.subr.mxu0 0.0
    %625 = vmatpush1.msra.mxu0 0.0
    %626 = vmatprep.subr.mxu0 0.0
    %627 = vmatpush1.msra.mxu0 0.0
    %628 = vmatprep.subr.mxu0 0.0
    %629 = vmatpush1.msra.mxu0 0.0
    %630 = vmatprep.subr.mxu0 0.0
    %631 = vmatpush1.msra.mxu0 0.0
    %632 = vmatprep.subr.mxu0 0.0
    %633 = vmatpush1.msra.mxu0 0.0
    %634 = vmatprep.subr.mxu0 0.0
    %635 = vmatpush1.msra.mxu0 0.0
    %636 = vmatprep.subr.mxu0 0.0
    %637 = vmatpush1.msra.mxu0 0.0
    %638 = vmatprep.subr.mxu0 0.0
    %639 = vmatpush1.msra.mxu0 0.0
    %640 = vmatprep.mubr.f32.mxu0 0.0
    %641 = vmatmul.mubr.f32.gmra.mrb[0].mxu0 %v574
    %v642 = vpop.f32.mrb[0].mxu0
    %v643 = vadd.f32 0.0, %v642
    %v644 = vpop.f32.mrb[0].mxu0
    %645 = vdwg.mxu0
    %v647 = vsel %vm572, %v570, 0
    %649 = vmatprep.subr.mxu0 0.0
    %650 = vmatpush1.msra.mxu0 %v571
    %651 = vmatprep.subr.mxu0 0.0
    %652 = vmatpush1.msra.mxu0 0.0
    %653 = vmatprep.subr.mxu0 0.0
    %654 = vmatpush1.msra.mxu0 0.0
    %655 = vmatprep.subr.mxu0 0.0
    %656 = vmatpush1.msra.mxu0 0.0
    %657 = vmatprep.subr.mxu0 0.0
    %658 = vmatpush1.msra.mxu0 0.0
    %659 = vmatprep.subr.mxu0 0.0
    %660 = vmatpush1.msra.mxu0 0.0
    %661 = vmatprep.subr.mxu0 0.0
    %662 = vmatpush1.msra.mxu0 0.0
    %663 = vmatprep.subr.mxu0 0.0
    %664 = vmatpush1.msra.mxu0 0.0
    %665 = vmatprep.subr.mxu0 0.0
    %666 = vmatpush1.msra.mxu0 0.0
    %667 = vmatprep.subr.mxu0 0.0
    %668 = vmatpush1.msra.mxu0 0.0
    %669 = vmatprep.subr.mxu0 0.0
    %670 = vmatpush1.msra.mxu0 0.0
    %671 = vmatprep.subr.mxu0 0.0
    %672 = vmatpush1.msra.mxu0 0.0
    %673 = vmatprep.subr.mxu0 0.0
    %674 = vmatpush1.msra.mxu0 0.0
    %675 = vmatprep.subr.mxu0 0.0
    %676 = vmatpush1.msra.mxu0 0.0
    %677 = vmatprep.subr.mxu0 0.0
    %678 = vmatpush1.msra.mxu0 0.0
    %679 = vmatprep.subr.mxu0 0.0
    %680 = vmatpush1.msra.mxu0 0.0
    %681 = vmatprep.subr.mxu0 0.0
    %682 = vmatpush1.msra.mxu0 0.0
    %683 = vmatprep.subr.mxu0 0.0
    %684 = vmatpush1.msra.mxu0 0.0
    %685 = vmatprep.subr.mxu0 0.0
    %686 = vmatpush1.msra.mxu0 0.0
    %687 = vmatprep.subr.mxu0 0.0
    %688 = vmatpush1.msra.mxu0 0.0
    %689 = vmatprep.subr.mxu0 0.0
    %690 = vmatpush1.msra.mxu0 0.0
    %691 = vmatprep.subr.mxu0 0.0
    %692 = vmatpush1.msra.mxu0 0.0
    %693 = vmatprep.subr.mxu0 0.0
    %694 = vmatpush1.msra.mxu0 0.0
    %695 = vmatprep.subr.mxu0 0.0
    %696 = vmatpush1.msra.mxu0 0.0
    %697 = vmatprep.subr.mxu0 0.0
    %698 = vmatpush1.msra.mxu0 0.0
    %699 = vmatprep.subr.mxu0 0.0
    %700 = vmatpush1.msra.mxu0 0.0
    %701 = vmatprep.subr.mxu0 0.0
    %702 = vmatpush1.msra.mxu0 0.0
    %703 = vmatprep.subr.mxu0 0.0
    %704 = vmatpush1.msra.mxu0 0.0
    %705 = vmatprep.subr.mxu0 0.0
    %706 = vmatpush1.msra.mxu0 0.0
    %707 = vmatprep.subr.mxu0 0.0
    %708 = vmatpush1.msra.mxu0 0.0
    %709 = vmatprep.subr.mxu0 0.0
    %710 = vmatpush1.msra.mxu0 0.0
    %711 = vmatprep.subr.mxu0 0.0
    %712 = vmatpush1.msra.mxu0 0.0
    %713 = vmatprep.mubr.f32.mxu0 0.0
    %714 = vmatmul.mubr.f32.gmra.mrb[0].mxu0 %v647
    %v715 = vpop.f32.mrb[0].mxu0
    %v716 = vadd.f32 0.0, %v715
    %v717 = vpop.f32.mrb[0].mxu0
    %718 = vdwg.mxu0
    %v719 = vlaneseq
    %v720 = vshrl.u32 %v719, 7
    %v721 = vsub.s32 0, %v720
    %v722 = vrot.slane %v643, %v721
    %v723 = vmul.f32 %v368, %v722
    %v724 = vmul.f32 %v371, %v722
    %v725 = vmul.f32 %v376, %v722
    %v726 = vmul.f32 %v379, %v722
    %v727 = vlaneseq
    %v728 = vshrl.u32 %v727, 7
    %v729 = vsub.s32 0, %v728
    %v730 = vrot.slane %v716, %v729
    %v731 = vadd.f32 %v723, %v730
    %v732 = vadd.f32 %v724, %v730
    %v733 = vadd.f32 %v725, %v730
    %v734 = vadd.f32 %v726, %v730
    %v735 = vmax.f32 %v731, 0.0
    %v736 = vmax.f32 %v732, 0.0
    %v737 = vmax.f32 %v733, 0.0
    %v738 = vmax.f32 %v734, 0.0
    %739 = vst [vmem:[#allocation2 + $0x1] sm:$0xff] %v735
    %740 = vst [vmem:[#allocation2 + $0x9] sm:$0xff] %v736
    %741 = vst [vmem:[#allocation2 + $0x19] sm:$0xff] %v737
    %742 = vst [vmem:[#allocation2 + $0x21] sm:$0xff] %v738
    %v743 = vld [vmem:[#allocation2] sm:$0xff]
    %v744 = vld [vmem:[#allocation2 + $0x8] sm:$0xff]
    %v745 = vld [vmem:[#allocation2 + $0x18] sm:$0xff]
    %v746 = vld [vmem:[#allocation2 + $0x20] sm:$0xff]
    %v747 = vld [vmem:[#allocation2 + $0x1] sm:$0xff]
    %v748 = vld [vmem:[#allocation2 + $0x9] sm:$0xff]
    %v749 = vld [vmem:[#allocation2 + $0x19] sm:$0xff]
    %v750 = vld [vmem:[#allocation2 + $0x21] sm:$0xff]
    %v751 = vld [vmem:[#allocation2 + $0x2] sm:$0xff]
    %v752 = vld [vmem:[#allocation2 + $0xa] sm:$0xff]
    %v753 = vld [vmem:[#allocation2 + $0x1a] sm:$0xff]
    %v754 = vld [vmem:[#allocation2 + $0x22] sm:$0xff]
    %v755 = vpack.c.bf16 %v744, %v743
    %v756 = vpack.c.bf16 %v748, %v747
    %v757 = vpack.c.bf16 %v752, %v751
    %v758 = vpack.c.bf16 %v746, %v745
    %v759 = vpack.c.bf16 %v750, %v749
    %v760 = vpack.c.bf16 %v754, %v753
    %v761 = vld [vmem:[#allocation6] sm:$0xf]
    %v762 = vld [vmem:[#allocation6 + $0x4] sm:$0xf]
    %v763 = vld [vmem:[#allocation6 + $0x8] sm:$0xf]
    %v764 = vld [vmem:[#allocation6 + $0xc] sm:$0xf]
    %v765 = vld [vmem:[#allocation6 + $0x10] sm:$0xf]
    %v766 = vld [vmem:[#allocation6 + $0x14] sm:$0xf]
    %v767 = vld [vmem:[#allocation6 + $0x18] sm:$0xf]
    %v768 = vld [vmem:[#allocation6 + $0x1c] sm:$0xf]
    %v769 = vld [vmem:[#allocation6 + $0x20] sm:$0xf]
    %v770 = vld [vmem:[#allocation6 + $0x24] sm:$0xf]
    %v771 = vld [vmem:[#allocation6 + $0x28] sm:$0xf]
    %v772 = vld [vmem:[#allocation6 + $0x2c] sm:$0xf]
    %v773 = vld [vmem:[#allocation6 + $0x30] sm:$0xf]
    %v774 = vld [vmem:[#allocation6 + $0x34] sm:$0xf]
    %v775 = vld [vmem:[#allocation6 + $0x38] sm:$0xf]
    %v776 = vld [vmem:[#allocation6 + $0x3c] sm:$0xf]
    %v777 = vld [vmem:[#allocation6 + $0x40] sm:$0xf]
    %v778 = vld [vmem:[#allocation6 + $0x44] sm:$0xf]
    %v779 = vld [vmem:[#allocation6 + $0x48] sm:$0xf]
    %v780 = vld [vmem:[#allocation6 + $0x4c] sm:$0xf]
    %v781 = vld [vmem:[#allocation6 + $0x50] sm:$0xf]
    %v782 = vld [vmem:[#allocation6 + $0x54] sm:$0xf]
    %v783 = vld [vmem:[#allocation6 + $0x58] sm:$0xf]
    %v784 = vld [vmem:[#allocation6 + $0x5c] sm:$0xf]
    %v785 = vld [vmem:[#allocation6 + $0x60] sm:$0xf]
    %v786 = vld [vmem:[#allocation6 + $0x64] sm:$0xf]
    %v787 = vld [vmem:[#allocation6 + $0x68] sm:$0xf]
    %v788 = vld [vmem:[#allocation6 + $0x6c] sm:$0xf]
    %v789 = vld [vmem:[#allocation6 + $0x70] sm:$0xf]
    %v790 = vld [vmem:[#allocation6 + $0x74] sm:$0xf]
    %v791 = vld [vmem:[#allocation6 + $0x78] sm:$0xf]
    %v792 = vld [vmem:[#allocation6 + $0x7c] sm:$0xf]
    %v793 = vld [vmem:[#allocation6 + $0x80] sm:$0xf]
    %v794 = vld [vmem:[#allocation6 + $0x84] sm:$0xf]
    %v795 = vld [vmem:[#allocation6 + $0x88] sm:$0xf]
    %v796 = vld [vmem:[#allocation6 + $0x8c] sm:$0xf]
    %v797 = vld [vmem:[#allocation6 + $0x90] sm:$0xf]
    %v798 = vld [vmem:[#allocation6 + $0x94] sm:$0xf]
    %v799 = vld [vmem:[#allocation6 + $0x98] sm:$0xf]
    %v800 = vld [vmem:[#allocation6 + $0x9c] sm:$0xf]
    %v801 = vld [vmem:[#allocation6 + $0xa0] sm:$0xf]
    %v802 = vld [vmem:[#allocation6 + $0xa4] sm:$0xf]
    %v803 = vld [vmem:[#allocation6 + $0xa8] sm:$0xf]
    %v804 = vld [vmem:[#allocation6 + $0xac] sm:$0xf]
    %v805 = vld [vmem:[#allocation6 + $0xb0] sm:$0xf]
    %v806 = vld [vmem:[#allocation6 + $0xb4] sm:$0xf]
    %v807 = vld [vmem:[#allocation6 + $0xb8] sm:$0xf]
    %v808 = vld [vmem:[#allocation6 + $0xbc] sm:$0xf]
    %v857 = vunpack.c.l.b16 %v761
    %v858 = vunpack.c.l.b16 %v762
    %v859 = vunpack.c.l.b16 %v763
    %v860 = vunpack.c.l.b16 %v764
    %v861 = vunpack.c.l.b16 %v765
    %v862 = vunpack.c.l.b16 %v766
    %v863 = vunpack.c.l.b16 %v767
    %v864 = vunpack.c.l.b16 %v768
    %v865 = vunpack.c.l.b16 %v769
    %v866 = vunpack.c.l.b16 %v770
    %v867 = vunpack.c.l.b16 %v771
    %v868 = vunpack.c.l.b16 %v772
    %v869 = vunpack.c.l.b16 %v773
    %v870 = vunpack.c.l.b16 %v774
    %v871 = vunpack.c.l.b16 %v775
    %v872 = vunpack.c.l.b16 %v776
    %v873 = vunpack.c.l.b16 %v777
    %v874 = vunpack.c.l.b16 %v778
    %v875 = vunpack.c.l.b16 %v779
    %v876 = vunpack.c.l.b16 %v780
    %v877 = vunpack.c.l.b16 %v781
    %v878 = vunpack.c.l.b16 %v782
    %v879 = vunpack.c.l.b16 %v783
    %v880 = vunpack.c.l.b16 %v784
    %v881 = vunpack.c.l.b16 %v785
    %v882 = vunpack.c.l.b16 %v786
    %v883 = vunpack.c.l.b16 %v787
    %v884 = vunpack.c.l.b16 %v788
    %v885 = vunpack.c.l.b16 %v789
    %v886 = vunpack.c.l.b16 %v790
    %v887 = vunpack.c.l.b16 %v791
    %v888 = vunpack.c.l.b16 %v792
    %v889 = vunpack.c.l.b16 %v793
    %v890 = vunpack.c.l.b16 %v794
    %v891 = vunpack.c.l.b16 %v795
    %v892 = vunpack.c.l.b16 %v796
    %v893 = vunpack.c.l.b16 %v797
    %v894 = vunpack.c.l.b16 %v798
    %v895 = vunpack.c.l.b16 %v799
    %v896 = vunpack.c.l.b16 %v800
    %v897 = vunpack.c.l.b16 %v801
    %v898 = vunpack.c.l.b16 %v802
    %v899 = vunpack.c.l.b16 %v803
    %v900 = vunpack.c.l.b16 %v804
    %v901 = vunpack.c.l.b16 %v805
    %v902 = vunpack.c.l.b16 %v806
    %v903 = vunpack.c.l.b16 %v807
    %v904 = vunpack.c.l.b16 %v808
    %v905 = vpack.c.b16 %v858, %v857
    %v906 = vpack.c.b16 %v860, %v859
    %v907 = vpack.c.b16 %v862, %v861
    %v908 = vpack.c.b16 %v864, %v863
    %v909 = vpack.c.b16 %v866, %v865
    %v910 = vpack.c.b16 %v868, %v867
    %v911 = vpack.c.b16 %v870, %v869
    %v912 = vpack.c.b16 %v872, %v871
    %v913 = vpack.c.b16 %v874, %v873
    %v914 = vpack.c.b16 %v876, %v875
    %v915 = vpack.c.b16 %v878, %v877
    %v916 = vpack.c.b16 %v880, %v879
    %v917 = vpack.c.b16 %v882, %v881
    %v918 = vpack.c.b16 %v884, %v883
    %v919 = vpack.c.b16 %v886, %v885
    %v920 = vpack.c.b16 %v888, %v887
    %v921 = vpack.c.b16 %v890, %v889
    %v922 = vpack.c.b16 %v892, %v891
    %v923 = vpack.c.b16 %v894, %v893
    %v924 = vpack.c.b16 %v896, %v895
    %v925 = vpack.c.b16 %v898, %v897
    %v926 = vpack.c.b16 %v900, %v899
    %v927 = vpack.c.b16 %v902, %v901
    %v928 = vpack.c.b16 %v904, %v903
    %953 = vmatprep.subr.bf16.mxu0 0
    %954 = vmatpush1.bf16.msra.mxu0 %v905
    %955 = vmatprep.subr.bf16.mxu0 0
    %956 = vmatpush1.bf16.msra.mxu0 %v906
    %957 = vmatprep.subr.bf16.mxu0 0
    %958 = vmatpush1.bf16.msra.mxu0 %v907
    %959 = vmatprep.subr.bf16.mxu0 0
    %960 = vmatpush1.bf16.msra.mxu0 %v908
    %961 = vmatprep.subr.bf16.mxu0 0
    %962 = vmatpush1.bf16.msra.mxu0 %v909
    %963 = vmatprep.subr.bf16.mxu0 0
    %964 = vmatpush1.bf16.msra.mxu0 %v910
    %965 = vmatprep.subr.bf16.mxu0 0
    %966 = vmatpush1.bf16.msra.mxu0 %v911
    %967 = vmatprep.subr.bf16.mxu0 0
    %968 = vmatpush1.bf16.msra.mxu0 %v912
    %969 = vmatprep.subr.bf16.mxu0 0
    %970 = vmatpush1.bf16.msra.mxu0 %v913
    %971 = vmatprep.subr.bf16.mxu0 0
    %972 = vmatpush1.bf16.msra.mxu0 %v914
    %973 = vmatprep.subr.bf16.mxu0 0
    %974 = vmatpush1.bf16.msra.mxu0 %v915
    %975 = vmatprep.subr.bf16.mxu0 0
    %976 = vmatpush1.bf16.msra.mxu0 %v916
    %977 = vmatprep.subr.bf16.mxu0 0
    %978 = vmatpush1.bf16.msra.mxu0 %v917
    %979 = vmatprep.subr.bf16.mxu0 0
    %980 = vmatpush1.bf16.msra.mxu0 %v918
    %981 = vmatprep.subr.bf16.mxu0 0
    %982 = vmatpush1.bf16.msra.mxu0 %v919
    %983 = vmatprep.subr.bf16.mxu0 0
    %984 = vmatpush1.bf16.msra.mxu0 %v920
    %985 = vmatprep.mubr.bf16.mxu0 %v756
    %986 = vmatmul.mubr.bf16.gmra.mrb[0].mxu0 %v755
    %v987 = vpop.f32.mrb[0].mxu0
    %v988 = vadd.f32 0.0, %v987
    %v989 = vpop.f32.mrb[0].mxu0
    %v990 = vpop.f32.mrb[0].mxu0
    %v991 = vadd.f32 0.0, %v990
    %v992 = vpop.f32.mrb[0].mxu0
    %993 = vmatprep.mubr.bf16.mxu0 %v759
    %994 = vmatmul.mubr.bf16.gmra.mrb[0].mxu0 %v758
    %v995 = vpop.f32.mrb[0].mxu0
    %v996 = vadd.f32 0.0, %v995
    %v997 = vpop.f32.mrb[0].mxu0
    %v998 = vpop.f32.mrb[0].mxu0
    %v999 = vadd.f32 0.0, %v998
    %v1000 = vpop.f32.mrb[0].mxu0
    %1001 = vdwg.mxu0
    %1002 = vmatprep.subr.bf16.mxu0 0
    %1003 = vmatpush1.bf16.msra.mxu0 %v921
    %1004 = vmatprep.subr.bf16.mxu0 0
    %1005 = vmatpush1.bf16.msra.mxu0 %v922
    %1006 = vmatprep.subr.bf16.mxu0 0
    %1007 = vmatpush1.bf16.msra.mxu0 %v923
    %1008 = vmatprep.subr.bf16.mxu0 0
    %1009 = vmatpush1.bf16.msra.mxu0 %v924
    %1010 = vmatprep.subr.bf16.mxu0 0
    %1011 = vmatpush1.bf16.msra.mxu0 %v925
    %1012 = vmatprep.subr.bf16.mxu0 0
    %1013 = vmatpush1.bf16.msra.mxu0 %v926
    %1014 = vmatprep.subr.bf16.mxu0 0
    %1015 = vmatpush1.bf16.msra.mxu0 %v927
    %1016 = vmatprep.subr.bf16.mxu0 0
    %1017 = vmatpush1.bf16.msra.mxu0 %v928
    %1018 = vmatprep.subr.bf16.mxu0 0
    %1019 = vmatpush1.bf16.msra.mxu0 0
    %1020 = vmatprep.subr.bf16.mxu0 0
    %1021 = vmatpush1.bf16.msra.mxu0 0
    %1022 = vmatprep.subr.bf16.mxu0 0
    %1023 = vmatpush1.bf16.msra.mxu0 0
    %1024 = vmatprep.subr.bf16.mxu0 0
    %1025 = vmatpush1.bf16.msra.mxu0 0
    %1026 = vmatprep.subr.bf16.mxu0 0
    %1027 = vmatpush1.bf16.msra.mxu0 0
    %1028 = vmatprep.subr.bf16.mxu0 0
    %1029 = vmatpush1.bf16.msra.mxu0 0
    %1030 = vmatprep.subr.bf16.mxu0 0
    %1031 = vmatpush1.bf16.msra.mxu0 0
    %1032 = vmatprep.subr.bf16.mxu0 0
    %1033 = vmatpush1.bf16.msra.mxu0 0
    %1034 = vmatprep.mubr.bf16.mxu0 0
    %1035 = vmatmul.mubr.bf16.gmra.mrb[0].mxu0 %v757
    %v1036 = vpop.f32.mrb[0].mxu0
    %v1037 = vadd.f32 %v988, %v1036
    %v1038 = vpop.f32.mrb[0].mxu0
    %v1039 = vpop.f32.mrb[0].mxu0
    %v1040 = vadd.f32 %v991, %v1039
    %v1041 = vpop.f32.mrb[0].mxu0
    %1042 = vmatprep.mubr.bf16.mxu0 0
    %1043 = vmatmul.mubr.bf16.gmra.mrb[0].mxu0 %v760
    %v1044 = vpop.f32.mrb[0].mxu0
    %v1045 = vadd.f32 %v996, %v1044
    %v1046 = vpop.f32.mrb[0].mxu0
    %v1047 = vpop.f32.mrb[0].mxu0
    %v1048 = vadd.f32 %v999, %v1047
    %v1049 = vpop.f32.mrb[0].mxu0
    %1050 = vdwg.mxu0
    %v1051 = vadd.f32 %v1037, %v1040
    %v1052 = vadd.f32 %v1051, %v1045
    %v1053 = vadd.f32 %v1052, %v1048
    %v1054 = vrot.slane %v1053, 4
    %v1055 = vadd.f32 %v1053, %v1054
    %v1056 = vrot.slane %v1055, 2
    %v1057 = vadd.f32 %v1055, %v1056
    %v1058 = vrot.slane %v1057, 1
    %v1059 = vadd.f32 %v1057, %v1058
    %v1060 = vld [vmem:[%s7] sm:$0xff]
    %v1061 = vld [vmem:[%s7 + $0x8] sm:$0xff]
    %v1062 = vld [vmem:[%s7 + $0x10] sm:$0xff]
    %v1063 = vld [vmem:[%s7 + $0x18] sm:$0xff]
    %v1064 = vld [vmem:[%s7 + $0x20] sm:$0xff]
    %v1065 = vld [vmem:[%s7 + $0x28] sm:$0xff]
    %v1066 = vld [vmem:[%s7 + $0x30] sm:$0xff]
    %v1067 = vld [vmem:[%s7 + $0x38] sm:$0xff]
    %v1068 = vld [vmem:[%s7 + $0x40] sm:$0xff]
    %v1069 = vld [vmem:[%s7 + $0x48] sm:$0xff]
    %v1070 = vld [vmem:[%s7 + $0x50] sm:$0xff]
    %v1071 = vld [vmem:[%s7 + $0x58] sm:$0xff]
    %v1072 = vld [vmem:[%s7 + $0x60] sm:$0xff]
    %v1073 = vld [vmem:[%s7 + $0x68] sm:$0xff]
    %v1074 = vld [vmem:[%s7 + $0x70] sm:$0xff]
    %v1075 = vld [vmem:[%s7 + $0x78] sm:$0xff]
    %1076 = vmatprep.subr.mxu0 0.0
    %1077 = vmatpush1.msra.mxu0 %v1060
    %1078 = vmatprep.subr.mxu0 0.0
    %1079 = vmatpush1.msra.mxu0 %v1061
    %1080 = vmatprep.subr.mxu0 0.0
    %1081 = vmatpush1.msra.mxu0 %v1062
    %1082 = vmatprep.subr.mxu0 0.0
    %1083 = vmatpush1.msra.mxu0 %v1063
    %1084 = vmatprep.subr.mxu0 0.0
    %1085 = vmatpush1.msra.mxu0 %v1064
    %1086 = vmatprep.subr.mxu0 0.0
    %1087 = vmatpush1.msra.mxu0 %v1065
    %1088 = vmatprep.subr.mxu0 0.0
    %1089 = vmatpush1.msra.mxu0 %v1066
    %1090 = vmatprep.subr.mxu0 0.0
    %1091 = vmatpush1.msra.mxu0 %v1067
    %1092 = vmatprep.subr.mxu0 0.0
    %1093 = vmatpush1.msra.mxu0 %v1068
    %1094 = vmatprep.subr.mxu0 0.0
    %1095 = vmatpush1.msra.mxu0 %v1069
    %1096 = vmatprep.subr.mxu0 0.0
    %1097 = vmatpush1.msra.mxu0 %v1070
    %1098 = vmatprep.subr.mxu0 0.0
    %1099 = vmatpush1.msra.mxu0 %v1071
    %1100 = vmatprep.subr.mxu0 0.0
    %1101 = vmatpush1.msra.mxu0 %v1072
    %1102 = vmatprep.subr.mxu0 0.0
    %1103 = vmatpush1.msra.mxu0 %v1073
    %1104 = vmatprep.subr.mxu0 0.0
    %1105 = vmatpush1.msra.mxu0 %v1074
    %1106 = vmatprep.subr.mxu0 0.0
    %1107 = vmatpush1.msra.mxu0 %v1075
    %1108 = vmatprep.subr.mxu0 0.0
    %1109 = vmatpush1.msra.mxu0 0.0
    %1110 = vmatprep.subr.mxu0 0.0
    %1111 = vmatpush1.msra.mxu0 0.0
    %1112 = vmatprep.subr.mxu0 0.0
    %1113 = vmatpush1.msra.mxu0 0.0
    %1114 = vmatprep.subr.mxu0 0.0
    %1115 = vmatpush1.msra.mxu0 0.0
    %1116 = vmatprep.subr.mxu0 0.0
    %1117 = vmatpush1.msra.mxu0 0.0
    %1118 = vmatprep.subr.mxu0 0.0
    %1119 = vmatpush1.msra.mxu0 0.0
    %1120 = vmatprep.subr.mxu0 0.0
    %1121 = vmatpush1.msra.mxu0 0.0
    %1122 = vmatprep.subr.mxu0 0.0
    %1123 = vmatpush1.msra.mxu0 0.0
    %1124 = vmatprep.subr.mxu0 0.0
    %1125 = vmatpush1.msra.mxu0 0.0
    %1126 = vmatprep.subr.mxu0 0.0
    %1127 = vmatpush1.msra.mxu0 0.0
    %1128 = vmatprep.subr.mxu0 0.0
    %1129 = vmatpush1.msra.mxu0 0.0
    %1130 = vmatprep.subr.mxu0 0.0
    %1131 = vmatpush1.msra.mxu0 0.0
    %1132 = vmatprep.subr.mxu0 0.0
    %1133 = vmatpush1.msra.mxu0 0.0
    %1134 = vmatprep.subr.mxu0 0.0
    %1135 = vmatpush1.msra.mxu0 0.0
    %1136 = vmatprep.subr.mxu0 0.0
    %1137 = vmatpush1.msra.mxu0 0.0
    %1138 = vmatprep.subr.mxu0 0.0
    %1139 = vmatpush1.msra.mxu0 0.0
    %1140 = vmatprep.mubr.f32.mxu0 0.0
    %1141 = vmatmul.mubr.f32.gmra.mrb[0].mxu0 %v1059
    %v1142 = vpop.f32.mrb[0].mxu0
    %v1143 = vadd.f32 0.0, %v1142
    %v1144 = vpop.f32.mrb[0].mxu0
    %1145 = vdwg.mxu0
    %v1146 = vmul.f32 %v1037, %v1037
    %v1147 = vmul.f32 %v1040, %v1040
    %v1148 = vmul.f32 %v1045, %v1045
    %v1149 = vmul.f32 %v1048, %v1048
    %v1150 = vadd.f32 %v1146, %v1147
    %v1151 = vadd.f32 %v1150, %v1148
    %v1152 = vadd.f32 %v1151, %v1149
    %v1153 = vrot.slane %v1152, 4
    %v1154 = vadd.f32 %v1152, %v1153
    %v1155 = vrot.slane %v1154, 2
    %v1156 = vadd.f32 %v1154, %v1155
    %v1157 = vrot.slane %v1156, 1
    %v1158 = vadd.f32 %v1156, %v1157
    %1159 = vmatprep.subr.mxu0 0.0
    %1160 = vmatpush1.msra.mxu0 %v1060
    %1161 = vmatprep.subr.mxu0 0.0
    %1162 = vmatpush1.msra.mxu0 %v1061
    %1163 = vmatprep.subr.mxu0 0.0
    %1164 = vmatpush1.msra.mxu0 %v1062
    %1165 = vmatprep.subr.mxu0 0.0
    %1166 = vmatpush1.msra.mxu0 %v1063
    %1167 = vmatprep.subr.mxu0 0.0
    %1168 = vmatpush1.msra.mxu0 %v1064
    %1169 = vmatprep.subr.mxu0 0.0
    %1170 = vmatpush1.msra.mxu0 %v1065
    %1171 = vmatprep.subr.mxu0 0.0
    %1172 = vmatpush1.msra.mxu0 %v1066
    %1173 = vmatprep.subr.mxu0 0.0
    %1174 = vmatpush1.msra.mxu0 %v1067
    %1175 = vmatprep.subr.mxu0 0.0
    %1176 = vmatpush1.msra.mxu0 %v1068
    %1177 = vmatprep.subr.mxu0 0.0
    %1178 = vmatpush1.msra.mxu0 %v1069
    %1179 = vmatprep.subr.mxu0 0.0
    %1180 = vmatpush1.msra.mxu0 %v1070
    %1181 = vmatprep.subr.mxu0 0.0
    %1182 = vmatpush1.msra.mxu0 %v1071
    %1183 = vmatprep.subr.mxu0 0.0
    %1184 = vmatpush1.msra.mxu0 %v1072
    %1185 = vmatprep.subr.mxu0 0.0
    %1186 = vmatpush1.msra.mxu0 %v1073
    %1187 = vmatprep.subr.mxu0 0.0
    %1188 = vmatpush1.msra.mxu0 %v1074
    %1189 = vmatprep.subr.mxu0 0.0
    %1190 = vmatpush1.msra.mxu0 %v1075
    %1191 = vmatprep.subr.mxu0 0.0
    %1192 = vmatpush1.msra.mxu0 0.0
    %1193 = vmatprep.subr.mxu0 0.0
    %1194 = vmatpush1.msra.mxu0 0.0
    %1195 = vmatprep.subr.mxu0 0.0
    %1196 = vmatpush1.msra.mxu0 0.0
    %1197 = vmatprep.subr.mxu0 0.0
    %1198 = vmatpush1.msra.mxu0 0.0
    %1199 = vmatprep.subr.mxu0 0.0
    %1200 = vmatpush1.msra.mxu0 0.0
    %1201 = vmatprep.subr.mxu0 0.0
    %1202 = vmatpush1.msra.mxu0 0.0
    %1203 = vmatprep.subr.mxu0 0.0
    %1204 = vmatpush1.msra.mxu0 0.0
    %1205 = vmatprep.subr.mxu0 0.0
    %1206 = vmatpush1.msra.mxu0 0.0
    %1207 = vmatprep.subr.mxu0 0.0
    %1208 = vmatpush1.msra.mxu0 0.0
    %1209 = vmatprep.subr.mxu0 0.0
    %1210 = vmatpush1.msra.mxu0 0.0
    %1211 = vmatprep.subr.mxu0 0.0
    %1212 = vmatpush1.msra.mxu0 0.0
    %1213 = vmatprep.subr.mxu0 0.0
    %1214 = vmatpush1.msra.mxu0 0.0
    %1215 = vmatprep.subr.mxu0 0.0
    %1216 = vmatpush1.msra.mxu0 0.0
    %1217 = vmatprep.subr.mxu0 0.0
    %1218 = vmatpush1.msra.mxu0 0.0
    %1219 = vmatprep.subr.mxu0 0.0
    %1220 = vmatpush1.msra.mxu0 0.0
    %1221 = vmatprep.subr.mxu0 0.0
    %1222 = vmatpush1.msra.mxu0 0.0
    %1223 = vmatprep.mubr.f32.mxu0 0.0
    %1224 = vmatmul.mubr.f32.gmra.mrb[0].mxu0 %v1158
    %v1225 = vpop.f32.mrb[0].mxu0
    %v1226 = vadd.f32 0.0, %v1225
    %v1227 = vpop.f32.mrb[0].mxu0
    %1228 = vdwg.mxu0
    %v1229 = vmul.f32 %v1143, 0.001953125
    %v1230 = vmul.f32 %v1226, 0.001953125
    %v1231 = vmul.f32 %v1229, %v1229
    %v1232 = vsub.f32 %v1230, %v1231
    %v1233 = vld [vmem:[%s5] sm:$0x1]
    %v1234 = vadd.f32 %v1232, 1e-05
    %v1235 = vrsqrt.pop %v1234
    %v1236 = vmul.f32 %v1233, %v1235
    %v1237 = vld [vmem:[%s6] sm:$0x1]
    %v1238 = vmul.f32 %v1229, %v1236
    %v1239 = vsub.f32 %v1237, %v1238
    %v1240 = vld [vmem:[%s8] sm:$0xff]
    %v1242 = vsel %vm572, %v1236, 0
    %1244 = vmatprep.subr.mxu0 0.0
    %1245 = vmatpush1.msra.mxu0 %v1240
    %1246 = vmatprep.subr.mxu0 0.0
    %1247 = vmatpush1.msra.mxu0 0.0
    %1248 = vmatprep.subr.mxu0 0.0
    %1249 = vmatpush1.msra.mxu0 0.0
    %1250 = vmatprep.subr.mxu0 0.0
    %1251 = vmatpush1.msra.mxu0 0.0
    %1252 = vmatprep.subr.mxu0 0.0
    %1253 = vmatpush1.msra.mxu0 0.0
    %1254 = vmatprep.subr.mxu0 0.0
    %1255 = vmatpush1.msra.mxu0 0.0
    %1256 = vmatprep.subr.mxu0 0.0
    %1257 = vmatpush1.msra.mxu0 0.0
    %1258 = vmatprep.subr.mxu0 0.0
    %1259 = vmatpush1.msra.mxu0 0.0
    %1260 = vmatprep.subr.mxu0 0.0
    %1261 = vmatpush1.msra.mxu0 0.0
    %1262 = vmatprep.subr.mxu0 0.0
    %1263 = vmatpush1.msra.mxu0 0.0
    %1264 = vmatprep.subr.mxu0 0.0
    %1265 = vmatpush1.msra.mxu0 0.0
    %1266 = vmatprep.subr.mxu0 0.0
    %1267 = vmatpush1.msra.mxu0 0.0
    %1268 = vmatprep.subr.mxu0 0.0
    %1269 = vmatpush1.msra.mxu0 0.0
    %1270 = vmatprep.subr.mxu0 0.0
    %1271 = vmatpush1.msra.mxu0 0.0
    %1272 = vmatprep.subr.mxu0 0.0
    %1273 = vmatpush1.msra.mxu0 0.0
    %1274 = vmatprep.subr.mxu0 0.0
    %1275 = vmatpush1.msra.mxu0 0.0
    %1276 = vmatprep.subr.mxu0 0.0
    %1277 = vmatpush1.msra.mxu0 0.0
    %1278 = vmatprep.subr.mxu0 0.0
    %1279 = vmatpush1.msra.mxu0 0.0
    %1280 = vmatprep.subr.mxu0 0.0
    %1281 = vmatpush1.msra.mxu0 0.0
    %1282 = vmatprep.subr.mxu0 0.0
    %1283 = vmatpush1.msra.mxu0 0.0
    %1284 = vmatprep.subr.mxu0 0.0
    %1285 = vmatpush1.msra.mxu0 0.0
    %1286 = vmatprep.subr.mxu0 0.0
    %1287 = vmatpush1.msra.mxu0 0.0
    %1288 = vmatprep.subr.mxu0 0.0
    %1289 = vmatpush1.msra.mxu0 0.0
    %1290 = vmatprep.subr.mxu0 0.0
    %1291 = vmatpush1.msra.mxu0 0.0
    %1292 = vmatprep.subr.mxu0 0.0
    %1293 = vmatpush1.msra.mxu0 0.0
    %1294 = vmatprep.subr.mxu0 0.0
    %1295 = vmatpush1.msra.mxu0 0.0
    %1296 = vmatprep.subr.mxu0 0.0
    %1297 = vmatpush1.msra.mxu0 0.0
    %1298 = vmatprep.subr.mxu0 0.0
    %1299 = vmatpush1.msra.mxu0 0.0
    %1300 = vmatprep.subr.mxu0 0.0
    %1301 = vmatpush1.msra.mxu0 0.0
    %1302 = vmatprep.subr.mxu0 0.0
    %1303 = vmatpush1.msra.mxu0 0.0
    %1304 = vmatprep.subr.mxu0 0.0
    %1305 = vmatpush1.msra.mxu0 0.0
    %1306 = vmatprep.subr.mxu0 0.0
    %1307 = vmatpush1.msra.mxu0 0.0
    %1308 = vmatprep.mubr.f32.mxu0 0.0
    %1309 = vmatmul.mubr.f32.gmra.mrb[0].mxu0 %v1242
    %v1310 = vpop.f32.mrb[0].mxu0
    %v1311 = vadd.f32 0.0, %v1310
    %v1312 = vpop.f32.mrb[0].mxu0
    %1313 = vdwg.mxu0
    %v1315 = vsel %vm572, %v1239, 0
    %1317 = vmatprep.subr.mxu0 0.0
    %1318 = vmatpush1.msra.mxu0 %v1240
    %1319 = vmatprep.subr.mxu0 0.0
    %1320 = vmatpush1.msra.mxu0 0.0
    %1321 = vmatprep.subr.mxu0 0.0
    %1322 = vmatpush1.msra.mxu0 0.0
    %1323 = vmatprep.subr.mxu0 0.0
    %1324 = vmatpush1.msra.mxu0 0.0
    %1325 = vmatprep.subr.mxu0 0.0
    %1326 = vmatpush1.msra.mxu0 0.0
    %1327 = vmatprep.subr.mxu0 0.0
    %1328 = vmatpush1.msra.mxu0 0.0
    %1329 = vmatprep.subr.mxu0 0.0
    %1330 = vmatpush1.msra.mxu0 0.0
    %1331 = vmatprep.subr.mxu0 0.0
    %1332 = vmatpush1.msra.mxu0 0.0
    %1333 = vmatprep.subr.mxu0 0.0
    %1334 = vmatpush1.msra.mxu0 0.0
    %1335 = vmatprep.subr.mxu0 0.0
    %1336 = vmatpush1.msra.mxu0 0.0
    %1337 = vmatprep.subr.mxu0 0.0
    %1338 = vmatpush1.msra.mxu0 0.0
    %1339 = vmatprep.subr.mxu0 0.0
    %1340 = vmatpush1.msra.mxu0 0.0
    %1341 = vmatprep.subr.mxu0 0.0
    %1342 = vmatpush1.msra.mxu0 0.0
    %1343 = vmatprep.subr.mxu0 0.0
    %1344 = vmatpush1.msra.mxu0 0.0
    %1345 = vmatprep.subr.mxu0 0.0
    %1346 = vmatpush1.msra.mxu0 0.0
    %1347 = vmatprep.subr.mxu0 0.0
    %1348 = vmatpush1.msra.mxu0 0.0
    %1349 = vmatprep.subr.mxu0 0.0
    %1350 = vmatpush1.msra.mxu0 0.0
    %1351 = vmatprep.subr.mxu0 0.0
    %1352 = vmatpush1.msra.mxu0 0.0
    %1353 = vmatprep.subr.mxu0 0.0
    %1354 = vmatpush1.msra.mxu0 0.0
    %1355 = vmatprep.subr.mxu0 0.0
    %1356 = vmatpush1.msra.mxu0 0.0
    %1357 = vmatprep.subr.mxu0 0.0
    %1358 = vmatpush1.msra.mxu0 0.0
    %1359 = vmatprep.subr.mxu0 0.0
    %1360 = vmatpush1.msra.mxu0 0.0
    %1361 = vmatprep.subr.mxu0 0.0
    %1362 = vmatpush1.msra.mxu0 0.0
    %1363 = vmatprep.subr.mxu0 0.0
    %1364 = vmatpush1.msra.mxu0 0.0
    %1365 = vmatprep.subr.mxu0 0.0
    %1366 = vmatpush1.msra.mxu0 0.0
    %1367 = vmatprep.subr.mxu0 0.0
    %1368 = vmatpush1.msra.mxu0 0.0
    %1369 = vmatprep.subr.mxu0 0.0
    %1370 = vmatpush1.msra.mxu0 0.0
    %1371 = vmatprep.subr.mxu0 0.0
    %1372 = vmatpush1.msra.mxu0 0.0
    %1373 = vmatprep.subr.mxu0 0.0
    %1374 = vmatpush1.msra.mxu0 0.0
    %1375 = vmatprep.subr.mxu0 0.0
    %1376 = vmatpush1.msra.mxu0 0.0
    %1377 = vmatprep.subr.mxu0 0.0
    %1378 = vmatpush1.msra.mxu0 0.0
    %1379 = vmatprep.subr.mxu0 0.0
    %1380 = vmatpush1.msra.mxu0 0.0
    %1381 = vmatprep.mubr.f32.mxu0 0.0
    %1382 = vmatmul.mubr.f32.gmra.mrb[0].mxu0 %v1315
    %v1383 = vpop.f32.mrb[0].mxu0
    %v1384 = vadd.f32 0.0, %v1383
    %v1385 = vpop.f32.mrb[0].mxu0
    %1386 = vdwg.mxu0
    %v1387 = vlaneseq
    %v1388 = vshrl.u32 %v1387, 7
    %v1389 = vsub.s32 0, %v1388
    %v1390 = vrot.slane %v1311, %v1389
    %v1391 = vmul.f32 %v1037, %v1390
    %v1392 = vmul.f32 %v1040, %v1390
    %v1393 = vmul.f32 %v1045, %v1390
    %v1394 = vmul.f32 %v1048, %v1390
    %v1395 = vlaneseq
    %v1396 = vshrl.u32 %v1395, 7
    %v1397 = vsub.s32 0, %v1396
    %v1398 = vrot.slane %v1384, %v1397
    %v1399 = vadd.f32 %v1391, %v1398
    %v1400 = vadd.f32 %v1392, %v1398
    %v1401 = vadd.f32 %v1393, %v1398
    %v1402 = vadd.f32 %v1394, %v1398
    %v1403 = vadd.f32 %v62, %v1399
    %v1404 = vadd.f32 %v63, %v1400
    %v1405 = vadd.f32 %v64, %v1401
    %v1406 = vadd.f32 %v65, %v1402
    %1407 = vst [vmem:[#allocation8] sm:$0xff] %v1403
    %1408 = vst [vmem:[#allocation8 + $0x8] sm:$0xff] %v1404
    %1409 = vst [vmem:[#allocation8 + $0x10] sm:$0xff] %v1405
    %1410 = vst [vmem:[#allocation8 + $0x18] sm:$0xff] %v1406
    // Predicated region
    $region46: #{tpu_custom_call.1} parent=1 // pred_check
      _
    $region47: #{tpu_custom_call.1} parent=1 // pred_check_branch
      %1412 = sbr.rel (0) target = $region49
    $region48: #{tpu_custom_call.1} parent=1 // pred_region
      %s1414 = ssub.s32 512, 512
      %1415 = vsyncadd [#allocation5], %s1414
      %s1416 = sshll.u32 [#allocation8], 4
      %s1417 = int_to_ptr.vmem [resolvable:$true] %s1416
      %1422 = dma.vmem_to_hbm [thread:$0]  %s1417, 512, %s9, [#allocation5], 128, 128, 8
    $region49: #{tpu_custom_call.1} parent=1 // pred_fallthru
      _
    // Predicated region
    $region50: #{tpu_custom_call.1} parent=1 // pred_check
      _
    $region51: #{tpu_custom_call.1} parent=1 // pred_check_branch
      %1424 = sbr.rel (0) target = $region53
    $region52: #{tpu_custom_call.1} parent=1 // pred_region
      %1425 = dma.done [#allocation5], 512
    $region53: #{tpu_custom_call.1} parent=1 // pred_fallthru
      _
    %1426 = vsyncpa [#allocation4], 1
    %1427 = vsyncpa [#allocation7], 1
    %1428 = vsyncpa [#allocation5], 1

</llo_original>
